<compile_context>
chip_gen: v7x
topology: tpu7x:2x2x1
jax: 0.10.0
libtpu: 0.0.40
codegen_flags: <defaults>
</compile_context>

<pallas_src>
import functools

import jax
import jax.numpy as jnp
import numpy as np
from jax import lax
from jax.experimental import pallas as pl
from jax.experimental.pallas import tpu as pltpu

IN_PAD = 128  # padded LSTM layer-0 input width (>= 33)


def _lstm_encoder_kernel(x_ref, wih0_ref, whh0_ref, wcomb_ref, b_ref,
                         h0_ref, c0_ref,
                         out_ref, hout_ref, cout_ref,
                         ih0_scr):
    """Single invocation: whole-batch sequential multi-layer LSTM recurrence."""
    B = x_ref.shape[0]
    L = h0_ref.shape[0]
    H = h0_ref.shape[2]

    # ---- hoisted, batched layer-0 input projection (carry-independent) --------
    # one [B, IN_PAD] @ [IN_PAD, 4H] bf16 MXU matmul (f32 accumulation), layer-0
    # combined bias folded in.
    ih0_scr[...] = (
        jnp.dot(x_ref[...].astype(jnp.bfloat16),
                wih0_ref[...].astype(jnp.bfloat16),
                preferred_element_type=jnp.float32)
        + b_ref[0])

    # ---- hoist all loop-invariant weight / bias loads out of the recurrence ---
    w_hh0 = whh0_ref[...].astype(jnp.bfloat16)           # [H, 4H]
    w_xh_up, w_hh_up, b_up = [], [], []
    for l in range(1, L):                                # static over layers
        wc = wcomb_ref[l - 1]                            # [2H, 4H] (rows: W_ih | W_hh)
        w_xh_up.append(wc[:H, :].astype(jnp.bfloat16))
        w_hh_up.append(wc[H:, :].astype(jnp.bfloat16))
        b_up.append(b_ref[l])                            # [1, 4H] f32

    # ---- recurrent state lives in the fori_loop carry (vregs), not in VMEM ----
    h_init = tuple(h0_ref[l] for l in range(L))          # each [1, H] f32
    c_init = tuple(c0_ref[l] for l in range(L))

    def cell_fn(gates, c_prev):
        # One full-width sigmoid + one full-width tanh on the [1,4H] vreg (EUP),
        # then lane slices for the i/f/g/o gates (PyTorch order).  f32 math.
        sg = jax.nn.sigmoid(gates)
        th = jnp.tanh(gates)
        i_g = sg[:, 0 * H:1 * H]
        f_g = sg[:, 1 * H:2 * H]
        g_g = th[:, 2 * H:3 * H]
        o_g = sg[:, 3 * H:4 * H]
        c_new = f_g * c_prev + i_g * g_g
        h_new = o_g * jnp.tanh(c_new)
        return h_new, c_new

    def lstm_step(ih0_row, hs, cs):
        # layer 0: hoisted input term + recurrent dot (bf16 operands, f32 acc)
        gates = ih0_row + jnp.dot(hs[0].astype(jnp.bfloat16), w_hh0,
                                  preferred_element_type=jnp.float32)
        h_new, c_new = cell_fn(gates, cs[0])
        new_h, new_c = [h_new], [c_new]
        # layers 1..L-1: two INDEPENDENT dots (pipeline in the MXU; no lane concat)
        for l in range(1, L):                            # static unroll over layers
            gates = (jnp.dot(h_new.astype(jnp.bfloat16), w_xh_up[l - 1],
                             preferred_element_type=jnp.float32)
                     + jnp.dot(hs[l].astype(jnp.bfloat16), w_hh_up[l - 1],
                               preferred_element_type=jnp.float32)
                     + b_up[l - 1])
            h_new, c_new = cell_fn(gates, cs[l])
            new_h.append(h_new)
            new_c.append(c_new)
        return tuple(new_h), tuple(new_c), h_new

    # Batch loop: fori over groups of 8 (bounded unroll inside the body).
    group = 8 if B % 8 == 0 else 1
    n_groups = B // group

    def group_step(g, carry):
        hs, cs = carry
        base = pl.multiple_of(g * group, group)
        ih0_grp = ih0_scr[pl.ds(base, group), :]         # one [group, 4H] slab load
        rows = []
        for j in range(group):                           # static unroll of 8 steps
            hs, cs, h_top = lstm_step(ih0_grp[j:j + 1, :], hs, cs)
            rows.append(jnp.maximum(h_top, 0.0))         # ReLU only on the output copy
        # One grouped [group, H] store (off the dependent chain).
        out_ref[pl.ds(base, group), :] = jnp.concatenate(rows, axis=0)
        return (hs, cs)

    h_fin, c_fin = lax.fori_loop(0, n_groups, group_step, (h_init, c_init))

    # Final carried state written once (not per step).
    for l in range(L):
        hout_ref[l] = h_fin[l]
        cout_ref[l] = c_fin[l]


def encoder_forward(x, ip, port, hidden, cell, params):
    """JAX wrapper: embedding gathers + concat (glue), LSTM hot path in Pallas."""
    ip_table = params["ip_table"]        # [256, 1]
    port_table = params["port_table"]    # [70000, 4]
    w_ih0_pad = params["w_ih0_pad"]      # [IN_PAD, 4H]  (layer-0 input weights)
    w_hh0 = params["w_hh0"]              # [H, 4H]       (layer-0 recurrent weights)
    w_comb = params["w_comb"]            # [max(L-1,1), 2H, 4H]  (layers>0, packed)
    bias = params["bias"]                # [L, 1, 4H]    (b_ih + b_hh)

    B = x.shape[0]
    L, _, H = hidden.shape
    Lm1 = w_comb.shape[0]

    # Embedding lookups + concat are glue (gather stays in plain JAX).
    # TODO(synk): optionally fold these gathers into the kernel via scalar prefetch.
    ip_e = jnp.take(ip_table, ip, axis=0).reshape(B, -1)          # [B, 4]
    port_e = jnp.take(port_table, port, axis=0).reshape(B, -1)    # [B, 4]
    feat = jnp.concatenate([x, ip_e, port_e], axis=1)             # [B, 33]
    x_pad = jnp.pad(feat, ((0, 0), (0, IN_PAD - feat.shape[1])))  # [B, IN_PAD]

    grid_spec = pltpu.PrefetchScalarGridSpec(
        num_scalar_prefetch=0,
        grid=(1,),  # single invocation; batch recurrence runs inside the kernel
        in_specs=[
            pl.BlockSpec((B, IN_PAD), lambda i: (0, 0)),            # x_pad
            pl.BlockSpec((IN_PAD, 4 * H), lambda i: (0, 0)),        # w_ih0_pad
            pl.BlockSpec((H, 4 * H), lambda i: (0, 0)),             # w_hh0
            pl.BlockSpec((Lm1, 2 * H, 4 * H), lambda i: (0, 0, 0)),  # w_comb
            pl.BlockSpec((L, 1, 4 * H), lambda i: (0, 0, 0)),       # bias
            pl.BlockSpec((L, 1, H), lambda i: (0, 0, 0)),           # h0
            pl.BlockSpec((L, 1, H), lambda i: (0, 0, 0)),           # c0
        ],
        out_specs=[
            pl.BlockSpec((B, H), lambda i: (0, 0)),                 # outputs
            pl.BlockSpec((L, 1, H), lambda i: (0, 0, 0)),           # hidden_out
            pl.BlockSpec((L, 1, H), lambda i: (0, 0, 0)),           # cell_out
        ],
        scratch_shapes=[
            pltpu.VMEM((B, 4 * H), jnp.float32),  # hoisted layer-0 projection
        ],
    )

    outputs, h_out, c_out = pl.pallas_call(
        _lstm_encoder_kernel,
        out_shape=(
            jax.ShapeDtypeStruct((B, H), jnp.float32),
            jax.ShapeDtypeStruct((L, 1, H), jnp.float32),
            jax.ShapeDtypeStruct((L, 1, H), jnp.float32),
        ),
        grid_spec=grid_spec,
        compiler_params=pltpu.CompilerParams(
            dimension_semantics=("arbitrary",)),  # serial state carry
    )(x_pad, w_ih0_pad, w_hh0, w_comb, bias, hidden, cell)

    return outputs, (h_out, c_out)


def encoder_reference(x, ip, port, hidden, cell, params):
    """Pure-JAX f32 reference mirroring the PyTorch forward (for verification)."""
    ip_table = params["ip_table"]
    port_table = params["port_table"]

    B = x.shape[0]
    L, _, H = hidden.shape

    ip_e = jnp.take(ip_table, ip, axis=0).reshape(B, -1)
    port_e = jnp.take(port_table, port, axis=0).reshape(B, -1)
    feat = jnp.concatenate([x, ip_e, port_e], axis=1)  # [B, 33]

    # Unpack weights from the packed kernel layout (also validates the packing).
    w_ih = [params["w_ih0_pad"][:feat.shape[1], :]]
    w_hh = [params["w_hh0"]]
    for l in range(1, L):
        w_ih.append(params["w_comb"][l - 1, :H, :])
        w_hh.append(params["w_comb"][l - 1, H:, :])
    bias = params["bias"]

    h = [hidden[l, 0] for l in range(L)]
    c = [cell[l, 0] for l in range(L)]
    outs = []
    for b in range(B):
        xt = feat[b]
        for l in range(L):
            gates = xt @ w_ih[l] + h[l] @ w_hh[l] + bias[l, 0]
            i_g = jax.nn.sigmoid(gates[0 * H:1 * H])
            f_g = jax.nn.sigmoid(gates[1 * H:2 * H])
            g_g = jnp.tanh(gates[2 * H:3 * H])
            o_g = jax.nn.sigmoid(gates[3 * H:4 * H])
            c[l] = f_g * c[l] + i_g * g_g
            h[l] = o_g * jnp.tanh(c[l])
            xt = h[l]
        outs.append(jnp.maximum(xt, 0.0))
    return (jnp.stack(outs),
            (jnp.stack(h)[:, None, :], jnp.stack(c)[:, None, :]))


def init_params(key, num_layers, hidden_size, input_size=33,
                ip_embedding_size=1, port_embedding_size=4):
    """Deterministic synthetic parameter init, packed into the kernel layout."""
    H = hidden_size
    L = num_layers
    keys = jax.random.split(key, 2 + 3 * L)
    scale = 1.0 / np.sqrt(H)

    ip_table = jax.random.normal(keys[0], (256, ip_embedding_size), jnp.float32)
    port_table = jax.random.normal(keys[1], (70000, port_embedding_size),
                                   jnp.float32)

    Lm1 = max(L - 1, 1)
    w_ih0_pad = np.zeros((IN_PAD, 4 * H), np.float32)
    w_hh0 = np.zeros((H, 4 * H), np.float32)
    w_comb = np.zeros((Lm1, 2 * H, 4 * H), np.float32)  # rows 0..H: w_ih, H..2H: w_hh
    bias = np.zeros((L, 1, 4 * H), np.float32)
    for l in range(L):
        in_l = input_size if l == 0 else H
        w_ih_l = np.asarray(jax.random.uniform(keys[2 + 3 * l], (in_l, 4 * H),
                                               jnp.float32, -scale, scale))
        w_hh_l = np.asarray(jax.random.uniform(keys[3 + 3 * l], (H, 4 * H),
                                               jnp.float32, -scale, scale))
        # combined bias = b_ih + b_hh
        b_l = np.asarray(jax.random.uniform(keys[4 + 3 * l], (4 * H,),
                                            jnp.float32, -2 * scale, 2 * scale))
        if l == 0:
            w_ih0_pad[:in_l, :] = w_ih_l
            w_hh0[:] = w_hh_l
        else:
            w_comb[l - 1, :H, :] = w_ih_l
            w_comb[l - 1, H:, :] = w_hh_l
        bias[l, 0] = b_l

    return {
        "ip_table": ip_table,
        "port_table": port_table,
        "w_ih0_pad": jnp.asarray(w_ih0_pad),
        "w_hh0": jnp.asarray(w_hh0),
        "w_comb": jnp.asarray(w_comb),
        "bias": jnp.asarray(bias),
    }


if __name__ == "__main__":
    # Small shapes consistent with the module: LSTM input 33 = 25 raw features
    # + 4 IP-octet embeddings (size 1) + 1 port embedding (size 4).
    B = 8           # Encoder.batch_size (small for the demo; multiple of 8)
    H = 32          # hidden_size
    L = 2           # num_layers
    X_FEAT = 25

    key = jax.random.PRNGKey(0)
    kp, kx, kip, kport = jax.random.split(key, 4)

    params = init_params(kp, num_layers=L, hidden_size=H)

    x = jax.random.normal(kx, (B, X_FEAT), jnp.float32)
    ip = jax.random.randint(kip, (B, 4), 0, 256, jnp.int32)
    port = jax.random.randint(kport, (B, 1), 0, 70000, jnp.int32)
    # init_hidden / init_cell with bidirectional=1 -> zeros [L, 1, H]
    hidden0 = jnp.zeros((L, 1, H), jnp.float32)
    cell0 = jnp.zeros((L, 1, H), jnp.float32)

    # TODO(synk): save()/load()/desc-file I/O of the PyTorch module is host-side
    # file handling and is intentionally not reproduced.

    fwd = jax.jit(functools.partial(encoder_forward, params=params))
    outputs, (h_out, c_out) = fwd(x, ip, port, hidden0, cell0)
    jax.block_until_ready((outputs, h_out, c_out))

    # Verify against the pure-JAX f32 reference.  Tolerance is loosened relative
    # to a pure-f32 kernel because the kernel uses bf16 MXU operands (single-pass
    # matmuls) with f32 accumulation, per the perf review.
    ref_out, (ref_h, ref_c) = encoder_reference(x, ip, port, hidden0, cell0,
                                                params)
    np.testing.assert_allclose(np.asarray(outputs), np.asarray(ref_out),
                               rtol=2e-2, atol=2e-2)
    np.testing.assert_allclose(np.asarray(h_out), np.asarray(ref_h),
                               rtol=2e-2, atol=2e-2)
    np.testing.assert_allclose(np.asarray(c_out), np.asarray(ref_c),
                               rtol=2e-2, atol=2e-2)

    assert outputs.shape == (B, H)
    assert h_out.shape == (L, 1, H) and c_out.shape == (L, 1, H)
    print("KERNEL_OK")
</pallas_src>

<mosaic_0001>
module attributes {stable_mosaic.version = 11 : i64} {
  func.func @_lstm_encoder_kernel(%arg0: i32, %arg1: memref<8x128xf32, #tpu.memory_space<vmem>>, %arg2: memref<128x128xf32, #tpu.memory_space<vmem>>, %arg3: memref<32x128xf32, #tpu.memory_space<vmem>>, %arg4: memref<1x64x128xf32, #tpu.memory_space<vmem>>, %arg5: memref<2x1x128xf32, #tpu.memory_space<vmem>>, %arg6: memref<2x1x32xf32, #tpu.memory_space<vmem>>, %arg7: memref<2x1x32xf32, #tpu.memory_space<vmem>>, %arg8: memref<8x32xf32, #tpu.memory_space<vmem>>, %arg9: memref<2x1x32xf32, #tpu.memory_space<vmem>>, %arg10: memref<2x1x32xf32, #tpu.memory_space<vmem>>, %arg11: memref<8x128xf32, #tpu.memory_space<vmem>>) attributes {dimension_semantics = [#tpu.dimension_semantics<arbitrary>], iteration_bounds = array<i64: 1>, scalar_prefetch = 0 : i64, scratch_operands = 1 : i64, tpu.core_type = #tpu.core_type<tc>, window_params = [{pipeline_mode = #tpu.pipeline_mode<synchronous>, transform_indices = @transform_0, window_bounds = array<i64: 8, 128>}, {pipeline_mode = #tpu.pipeline_mode<synchronous>, transform_indices = @transform_1, window_bounds = array<i64: 128, 128>}, {pipeline_mode = #tpu.pipeline_mode<synchronous>, transform_indices = @transform_2, window_bounds = array<i64: 32, 128>}, {pipeline_mode = #tpu.pipeline_mode<synchronous>, transform_indices = @transform_3, window_bounds = array<i64: 1, 64, 128>}, {pipeline_mode = #tpu.pipeline_mode<synchronous>, transform_indices = @transform_4, window_bounds = array<i64: 2, 1, 128>}, {pipeline_mode = #tpu.pipeline_mode<synchronous>, transform_indices = @transform_5, window_bounds = array<i64: 2, 1, 32>}, {pipeline_mode = #tpu.pipeline_mode<synchronous>, transform_indices = @transform_6, window_bounds = array<i64: 2, 1, 32>}, {pipeline_mode = #tpu.pipeline_mode<synchronous>, transform_indices = @transform_7, window_bounds = array<i64: 8, 32>}, {pipeline_mode = #tpu.pipeline_mode<synchronous>, transform_indices = @transform_8, window_bounds = array<i64: 2, 1, 32>}, {pipeline_mode = #tpu.pipeline_mode<synchronous>, transform_indices = @transform_9, window_bounds = array<i64: 2, 1, 32>}]} {
    %c0 = arith.constant 0 : index
    %c0_0 = arith.constant 0 : index
    %0 = vector.load %arg1[%c0, %c0_0] : memref<8x128xf32, #tpu.memory_space<vmem>>, vector<8x128xf32>
    %1 = arith.truncf %0 : vector<8x128xf32> to vector<8x128xbf16>
    %c0_1 = arith.constant 0 : index
    %c0_2 = arith.constant 0 : index
    %2 = vector.load %arg2[%c0_1, %c0_2] : memref<128x128xf32, #tpu.memory_space<vmem>>, vector<128x128xf32>
    %3 = arith.truncf %2 : vector<128x128xf32> to vector<128x128xbf16>
    %cst = arith.constant dense<0.000000e+00> : vector<8x128xf32>
    %4 = tpu.matmul %1, %3, %cst {dimension_numbers = #tpu.dot_dimension_numbers<[1], [0], [0], [1], [0, 0, 1, 1], [], []>} : vector<8x128xbf16>, vector<128x128xbf16>, vector<8x128xf32> -> vector<8x128xf32>
    %c0_3 = arith.constant 0 : index
    %c0_4 = arith.constant 0 : index
    %c0_5 = arith.constant 0 : index
    %5 = vector.load %arg5[%c0_3, %c0_4, %c0_5] : memref<2x1x128xf32, #tpu.memory_space<vmem>>, vector<1x1x128xf32>
    %6 = vector.shape_cast %5 : vector<1x1x128xf32> to vector<1x128xf32>
    %7 = vector.broadcast %6 : vector<1x128xf32> to vector<8x128xf32>
    %8 = arith.addf %4, %7 : vector<8x128xf32>
    %c0_6 = arith.constant 0 : index
    %c0_7 = arith.constant 0 : index
    %9 = vector.load %arg11[%c0_6, %c0_7] : memref<8x128xf32, #tpu.memory_space<vmem>>, vector<8x128xf32>
    tpu.vector_store %arg11[%c0_6, %c0_7], %8 {strides = array<i32>} : memref<8x128xf32, #tpu.memory_space<vmem>>, vector<8x128xf32>,
    %c0_8 = arith.constant 0 : index
    %c0_9 = arith.constant 0 : index
    %10 = vector.load %arg3[%c0_8, %c0_9] : memref<32x128xf32, #tpu.memory_space<vmem>>, vector<32x128xf32>
    %11 = arith.truncf %10 : vector<32x128xf32> to vector<32x128xbf16>
    %c0_10 = arith.constant 0 : index
    %c0_11 = arith.constant 0 : index
    %c0_12 = arith.constant 0 : index
    %12 = vector.load %arg4[%c0_10, %c0_11, %c0_12] : memref<1x64x128xf32, #tpu.memory_space<vmem>>, vector<1x64x128xf32>
    %13 = vector.shape_cast %12 : vector<1x64x128xf32> to vector<64x128xf32>
    %14 = vector.extract_strided_slice %13 {offsets = [0, 0], sizes = [32, 128], strides = [1, 1]} : vector<64x128xf32> to vector<32x128xf32>
    %15 = arith.truncf %14 : vector<32x128xf32> to vector<32x128xbf16>
    %16 = vector.extract_strided_slice %13 {offsets = [32, 0], sizes = [32, 128], strides = [1, 1]} : vector<64x128xf32> to vector<32x128xf32>
    %17 = arith.truncf %16 : vector<32x128xf32> to vector<32x128xbf16>
    %c1 = arith.constant 1 : index
    %c0_13 = arith.constant 0 : index
    %c0_14 = arith.constant 0 : index
    %18 = vector.load %arg5[%c1, %c0_13, %c0_14] : memref<2x1x128xf32, #tpu.memory_space<vmem>>, vector<1x1x128xf32>
    %19 = vector.shape_cast %18 : vector<1x1x128xf32> to vector<1x128xf32>
    %c0_15 = arith.constant 0 : index
    %c0_16 = arith.constant 0 : index
    %c0_17 = arith.constant 0 : index
    %20 = vector.load %arg6[%c0_15, %c0_16, %c0_17] : memref<2x1x32xf32, #tpu.memory_space<vmem>>, vector<1x1x32xf32>
    %21 = vector.shape_cast %20 : vector<1x1x32xf32> to vector<1x32xf32>
    %c1_18 = arith.constant 1 : index
    %c0_19 = arith.constant 0 : index
    %c0_20 = arith.constant 0 : index
    %22 = vector.load %arg6[%c1_18, %c0_19, %c0_20] : memref<2x1x32xf32, #tpu.memory_space<vmem>>, vector<1x1x32xf32>
    %23 = vector.shape_cast %22 : vector<1x1x32xf32> to vector<1x32xf32>
    %c0_21 = arith.constant 0 : index
    %c0_22 = arith.constant 0 : index
    %c0_23 = arith.constant 0 : index
    %24 = vector.load %arg7[%c0_21, %c0_22, %c0_23] : memref<2x1x32xf32, #tpu.memory_space<vmem>>, vector<1x1x32xf32>
    %25 = vector.shape_cast %24 : vector<1x1x32xf32> to vector<1x32xf32>
    %c1_24 = arith.constant 1 : index
    %c0_25 = arith.constant 0 : index
    %c0_26 = arith.constant 0 : index
    %26 = vector.load %arg7[%c1_24, %c0_25, %c0_26] : memref<2x1x32xf32, #tpu.memory_space<vmem>>, vector<1x1x32xf32>
    %27 = vector.shape_cast %26 : vector<1x1x32xf32> to vector<1x32xf32>
    %c0_i32 = arith.constant 0 : i32
    %c8_i32 = arith.constant 8 : i32
    %28 = arith.muli %c0_i32, %c8_i32 : i32
    %29 = tpu.assume_multiple %28, 8 : i32
    %30 = arith.index_cast %29 : i32 to index
    %c0_27 = arith.constant 0 : index
    %31 = vector.load %arg11[%30, %c0_27] : memref<8x128xf32, #tpu.memory_space<vmem>>, vector<8x128xf32>
    %32 = vector.extract_strided_slice %31 {offsets = [0, 0], sizes = [1, 128], strides = [1, 1]} : vector<8x128xf32> to vector<1x128xf32>
    %33 = arith.truncf %21 : vector<1x32xf32> to vector<1x32xbf16>
    %cst_28 = arith.constant dense<0.000000e+00> : vector<1x128xf32>
    %34 = tpu.matmul %33, %11, %cst_28 {dimension_numbers = #tpu.dot_dimension_numbers<[1], [0], [0], [1], [0, 0, 1, 1], [], []>} : vector<1x32xbf16>, vector<32x128xbf16>, vector<1x128xf32> -> vector<1x128xf32>
    %35 = arith.addf %32, %34 : vector<1x128xf32>
    %36 = arith.negf %35 : vector<1x128xf32>
    %37 = math.exp %36 : vector<1x128xf32>
    %cst_29 = arith.constant 1.000000e+00 : f32
    %38 = vector.broadcast %cst_29 : f32 to vector<1x128xf32>
    %39 = arith.addf %38, %37 : vector<1x128xf32>
    %40 = arith.divf %38, %39 : vector<1x128xf32>
    %41 = math.tanh %35 : vector<1x128xf32>
    %42 = vector.extract_strided_slice %40 {offsets = [0, 0], sizes = [1, 32], strides = [1, 1]} : vector<1x128xf32> to vector<1x32xf32>
    %43 = vector.extract_strided_slice %40 {offsets = [0, 32], sizes = [1, 32], strides = [1, 1]} : vector<1x128xf32> to vector<1x32xf32>
    %44 = vector.extract_strided_slice %41 {offsets = [0, 64], sizes = [1, 32], strides = [1, 1]} : vector<1x128xf32> to vector<1x32xf32>
    %45 = vector.extract_strided_slice %40 {offsets = [0, 96], sizes = [1, 32], strides = [1, 1]} : vector<1x128xf32> to vector<1x32xf32>
    %46 = arith.mulf %43, %25 : vector<1x32xf32>
    %47 = arith.mulf %42, %44 : vector<1x32xf32>
    %48 = arith.addf %46, %47 : vector<1x32xf32>
    %49 = math.tanh %48 : vector<1x32xf32>
    %50 = arith.mulf %45, %49 : vector<1x32xf32>
    %51 = arith.truncf %50 : vector<1x32xf32> to vector<1x32xbf16>
    %cst_30 = arith.constant dense<0.000000e+00> : vector<1x128xf32>
    %52 = tpu.matmul %51, %15, %cst_30 {dimension_numbers = #tpu.dot_dimension_numbers<[1], [0], [0], [1], [0, 0, 1, 1], [], []>} : vector<1x32xbf16>, vector<32x128xbf16>, vector<1x128xf32> -> vector<1x128xf32>
    %53 = arith.truncf %23 : vector<1x32xf32> to vector<1x32xbf16>
    %cst_31 = arith.constant dense<0.000000e+00> : vector<1x128xf32>
    %54 = tpu.matmul %53, %17, %cst_31 {dimension_numbers = #tpu.dot_dimension_numbers<[1], [0], [0], [1], [0, 0, 1, 1], [], []>} : vector<1x32xbf16>, vector<32x128xbf16>, vector<1x128xf32> -> vector<1x128xf32>
    %55 = arith.addf %52, %54 : vector<1x128xf32>
    %56 = arith.addf %55, %19 : vector<1x128xf32>
    %57 = arith.negf %56 : vector<1x128xf32>
    %58 = math.exp %57 : vector<1x128xf32>
    %cst_32 = arith.constant 1.000000e+00 : f32
    %59 = vector.broadcast %cst_32 : f32 to vector<1x128xf32>
    %60 = arith.addf %59, %58 : vector<1x128xf32>
    %61 = arith.divf %59, %60 : vector<1x128xf32>
    %62 = math.tanh %56 : vector<1x128xf32>
    %63 = vector.extract_strided_slice %61 {offsets = [0, 0], sizes = [1, 32], strides = [1, 1]} : vector<1x128xf32> to vector<1x32xf32>
    %64 = vector.extract_strided_slice %61 {offsets = [0, 32], sizes = [1, 32], strides = [1, 1]} : vector<1x128xf32> to vector<1x32xf32>
    %65 = vector.extract_strided_slice %62 {offsets = [0, 64], sizes = [1, 32], strides = [1, 1]} : vector<1x128xf32> to vector<1x32xf32>
    %66 = vector.extract_strided_slice %61 {offsets = [0, 96], sizes = [1, 32], strides = [1, 1]} : vector<1x128xf32> to vector<1x32xf32>
    %67 = arith.mulf %64, %27 : vector<1x32xf32>
    %68 = arith.mulf %63, %65 : vector<1x32xf32>
    %69 = arith.addf %67, %68 : vector<1x32xf32>
    %70 = math.tanh %69 : vector<1x32xf32>
    %71 = arith.mulf %66, %70 : vector<1x32xf32>
    %cst_33 = arith.constant 0.000000e+00 : f32
    %72 = vector.broadcast %cst_33 : f32 to vector<1x32xf32>
    %73 = arith.maximumf %71, %72 : vector<1x32xf32>
    %74 = vector.extract_strided_slice %31 {offsets = [1, 0], sizes = [1, 128], strides = [1, 1]} : vector<8x128xf32> to vector<1x128xf32>
    %75 = arith.truncf %50 : vector<1x32xf32> to vector<1x32xbf16>
    %cst_34 = arith.constant dense<0.000000e+00> : vector<1x128xf32>
    %76 = tpu.matmul %75, %11, %cst_34 {dimension_numbers = #tpu.dot_dimension_numbers<[1], [0], [0], [1], [0, 0, 1, 1], [], []>} : vector<1x32xbf16>, vector<32x128xbf16>, vector<1x128xf32> -> vector<1x128xf32>
    %77 = arith.addf %74, %76 : vector<1x128xf32>
    %78 = arith.negf %77 : vector<1x128xf32>
    %79 = math.exp %78 : vector<1x128xf32>
    %cst_35 = arith.constant 1.000000e+00 : f32
    %80 = vector.broadcast %cst_35 : f32 to vector<1x128xf32>
    %81 = arith.addf %80, %79 : vector<1x128xf32>
    %82 = arith.divf %80, %81 : vector<1x128xf32>
    %83 = math.tanh %77 : vector<1x128xf32>
    %84 = vector.extract_strided_slice %82 {offsets = [0, 0], sizes = [1, 32], strides = [1, 1]} : vector<1x128xf32> to vector<1x32xf32>
    %85 = vector.extract_strided_slice %82 {offsets = [0, 32], sizes = [1, 32], strides = [1, 1]} : vector<1x128xf32> to vector<1x32xf32>
    %86 = vector.extract_strided_slice %83 {offsets = [0, 64], sizes = [1, 32], strides = [1, 1]} : vector<1x128xf32> to vector<1x32xf32>
    %87 = vector.extract_strided_slice %82 {offsets = [0, 96], sizes = [1, 32], strides = [1, 1]} : vector<1x128xf32> to vector<1x32xf32>
    %88 = arith.mulf %85, %48 : vector<1x32xf32>
    %89 = arith.mulf %84, %86 : vector<1x32xf32>
    %90 = arith.addf %88, %89 : vector<1x32xf32>
    %91 = math.tanh %90 : vector<1x32xf32>
    %92 = arith.mulf %87, %91 : vector<1x32xf32>
    %93 = arith.truncf %92 : vector<1x32xf32> to vector<1x32xbf16>
    %cst_36 = arith.constant dense<0.000000e+00> : vector<1x128xf32>
    %94 = tpu.matmul %93, %15, %cst_36 {dimension_numbers = #tpu.dot_dimension_numbers<[1], [0], [0], [1], [0, 0, 1, 1], [], []>} : vector<1x32xbf16>, vector<32x128xbf16>, vector<1x128xf32> -> vector<1x128xf32>
    %95 = arith.truncf %71 : vector<1x32xf32> to vector<1x32xbf16>
    %cst_37 = arith.constant dense<0.000000e+00> : vector<1x128xf32>
    %96 = tpu.matmul %95, %17, %cst_37 {dimension_numbers = #tpu.dot_dimension_numbers<[1], [0], [0], [1], [0, 0, 1, 1], [], []>} : vector<1x32xbf16>, vector<32x128xbf16>, vector<1x128xf32> -> vector<1x128xf32>
    %97 = arith.addf %94, %96 : vector<1x128xf32>
    %98 = arith.addf %97, %19 : vector<1x128xf32>
    %99 = arith.negf %98 : vector<1x128xf32>
    %100 = math.exp %99 : vector<1x128xf32>
    %cst_38 = arith.constant 1.000000e+00 : f32
    %101 = vector.broadcast %cst_38 : f32 to vector<1x128xf32>
    %102 = arith.addf %101, %100 : vector<1x128xf32>
    %103 = arith.divf %101, %102 : vector<1x128xf32>
    %104 = math.tanh %98 : vector<1x128xf32>
    %105 = vector.extract_strided_slice %103 {offsets = [0, 0], sizes = [1, 32], strides = [1, 1]} : vector<1x128xf32> to vector<1x32xf32>
    %106 = vector.extract_strided_slice %103 {offsets = [0, 32], sizes = [1, 32], strides = [1, 1]} : vector<1x128xf32> to vector<1x32xf32>
    %107 = vector.extract_strided_slice %104 {offsets = [0, 64], sizes = [1, 32], strides = [1, 1]} : vector<1x128xf32> to vector<1x32xf32>
    %108 = vector.extract_strided_slice %103 {offsets = [0, 96], sizes = [1, 32], strides = [1, 1]} : vector<1x128xf32> to vector<1x32xf32>
    %109 = arith.mulf %106, %69 : vector<1x32xf32>
    %110 = arith.mulf %105, %107 : vector<1x32xf32>
    %111 = arith.addf %109, %110 : vector<1x32xf32>
    %112 = math.tanh %111 : vector<1x32xf32>
    %113 = arith.mulf %108, %112 : vector<1x32xf32>
    %cst_39 = arith.constant 0.000000e+00 : f32
    %114 = vector.broadcast %cst_39 : f32 to vector<1x32xf32>
    %115 = arith.maximumf %113, %114 : vector<1x32xf32>
    %116 = vector.extract_strided_slice %31 {offsets = [2, 0], sizes = [1, 128], strides = [1, 1]} : vector<8x128xf32> to vector<1x128xf32>
    %117 = arith.truncf %92 : vector<1x32xf32> to vector<1x32xbf16>
    %cst_40 = arith.constant dense<0.000000e+00> : vector<1x128xf32>
    %118 = tpu.matmul %117, %11, %cst_40 {dimension_numbers = #tpu.dot_dimension_numbers<[1], [0], [0], [1], [0, 0, 1, 1], [], []>} : vector<1x32xbf16>, vector<32x128xbf16>, vector<1x128xf32> -> vector<1x128xf32>
    %119 = arith.addf %116, %118 : vector<1x128xf32>
    %120 = arith.negf %119 : vector<1x128xf32>
    %121 = math.exp %120 : vector<1x128xf32>
    %cst_41 = arith.constant 1.000000e+00 : f32
    %122 = vector.broadcast %cst_41 : f32 to vector<1x128xf32>
    %123 = arith.addf %122, %121 : vector<1x128xf32>
    %124 = arith.divf %122, %123 : vector<1x128xf32>
    %125 = math.tanh %119 : vector<1x128xf32>
    %126 = vector.extract_strided_slice %124 {offsets = [0, 0], sizes = [1, 32], strides = [1, 1]} : vector<1x128xf32> to vector<1x32xf32>
    %127 = vector.extract_strided_slice %124 {offsets = [0, 32], sizes = [1, 32], strides = [1, 1]} : vector<1x128xf32> to vector<1x32xf32>
    %128 = vector.extract_strided_slice %125 {offsets = [0, 64], sizes = [1, 32], strides = [1, 1]} : vector<1x128xf32> to vector<1x32xf32>
    %129 = vector.extract_strided_slice %124 {offsets = [0, 96], sizes = [1, 32], strides = [1, 1]} : vector<1x128xf32> to vector<1x32xf32>
    %130 = arith.mulf %127, %90 : vector<1x32xf32>
    %131 = arith.mulf %126, %128 : vector<1x32xf32>
    %132 = arith.addf %130, %131 : vector<1x32xf32>
    %133 = math.tanh %132 : vector<1x32xf32>
    %134 = arith.mulf %129, %133 : vector<1x32xf32>
    %135 = arith.truncf %134 : vector<1x32xf32> to vector<1x32xbf16>
    %cst_42 = arith.constant dense<0.000000e+00> : vector<1x128xf32>
    %136 = tpu.matmul %135, %15, %cst_42 {dimension_numbers = #tpu.dot_dimension_numbers<[1], [0], [0], [1], [0, 0, 1, 1], [], []>} : vector<1x32xbf16>, vector<32x128xbf16>, vector<1x128xf32> -> vector<1x128xf32>
    %137 = arith.truncf %113 : vector<1x32xf32> to vector<1x32xbf16>
    %cst_43 = arith.constant dense<0.000000e+00> : vector<1x128xf32>
    %138 = tpu.matmul %137, %17, %cst_43 {dimension_numbers = #tpu.dot_dimension_numbers<[1], [0], [0], [1], [0, 0, 1, 1], [], []>} : vector<1x32xbf16>, vector<32x128xbf16>, vector<1x128xf32> -> vector<1x128xf32>
    %139 = arith.addf %136, %138 : vector<1x128xf32>
    %140 = arith.addf %139, %19 : vector<1x128xf32>
    %141 = arith.negf %140 : vector<1x128xf32>
    %142 = math.exp %141 : vector<1x128xf32>
    %cst_44 = arith.constant 1.000000e+00 : f32
    %143 = vector.broadcast %cst_44 : f32 to vector<1x128xf32>
    %144 = arith.addf %143, %142 : vector<1x128xf32>
    %145 = arith.divf %143, %144 : vector<1x128xf32>
    %146 = math.tanh %140 : vector<1x128xf32>
    %147 = vector.extract_strided_slice %145 {offsets = [0, 0], sizes = [1, 32], strides = [1, 1]} : vector<1x128xf32> to vector<1x32xf32>
    %148 = vector.extract_strided_slice %145 {offsets = [0, 32], sizes = [1, 32], strides = [1, 1]} : vector<1x128xf32> to vector<1x32xf32>
    %149 = vector.extract_strided_slice %146 {offsets = [0, 64], sizes = [1, 32], strides = [1, 1]} : vector<1x128xf32> to vector<1x32xf32>
    %150 = vector.extract_strided_slice %145 {offsets = [0, 96], sizes = [1, 32], strides = [1, 1]} : vector<1x128xf32> to vector<1x32xf32>
    %151 = arith.mulf %148, %111 : vector<1x32xf32>
    %152 = arith.mulf %147, %149 : vector<1x32xf32>
    %153 = arith.addf %151, %152 : vector<1x32xf32>
    %154 = math.tanh %153 : vector<1x32xf32>
    %155 = arith.mulf %150, %154 : vector<1x32xf32>
    %cst_45 = arith.constant 0.000000e+00 : f32
    %156 = vector.broadcast %cst_45 : f32 to vector<1x32xf32>
    %157 = arith.maximumf %155, %156 : vector<1x32xf32>
    %158 = vector.extract_strided_slice %31 {offsets = [3, 0], sizes = [1, 128], strides = [1, 1]} : vector<8x128xf32> to vector<1x128xf32>
    %159 = arith.truncf %134 : vector<1x32xf32> to vector<1x32xbf16>
    %cst_46 = arith.constant dense<0.000000e+00> : vector<1x128xf32>
    %160 = tpu.matmul %159, %11, %cst_46 {dimension_numbers = #tpu.dot_dimension_numbers<[1], [0], [0], [1], [0, 0, 1, 1], [], []>} : vector<1x32xbf16>, vector<32x128xbf16>, vector<1x128xf32> -> vector<1x128xf32>
    %161 = arith.addf %158, %160 : vector<1x128xf32>
    %162 = arith.negf %161 : vector<1x128xf32>
    %163 = math.exp %162 : vector<1x128xf32>
    %cst_47 = arith.constant 1.000000e+00 : f32
    %164 = vector.broadcast %cst_47 : f32 to vector<1x128xf32>
    %165 = arith.addf %164, %163 : vector<1x128xf32>
    %166 = arith.divf %164, %165 : vector<1x128xf32>
    %167 = math.tanh %161 : vector<1x128xf32>
    %168 = vector.extract_strided_slice %166 {offsets = [0, 0], sizes = [1, 32], strides = [1, 1]} : vector<1x128xf32> to vector<1x32xf32>
    %169 = vector.extract_strided_slice %166 {offsets = [0, 32], sizes = [1, 32], strides = [1, 1]} : vector<1x128xf32> to vector<1x32xf32>
    %170 = vector.extract_strided_slice %167 {offsets = [0, 64], sizes = [1, 32], strides = [1, 1]} : vector<1x128xf32> to vector<1x32xf32>
    %171 = vector.extract_strided_slice %166 {offsets = [0, 96], sizes = [1, 32], strides = [1, 1]} : vector<1x128xf32> to vector<1x32xf32>
    %172 = arith.mulf %169, %132 : vector<1x32xf32>
    %173 = arith.mulf %168, %170 : vector<1x32xf32>
    %174 = arith.addf %172, %173 : vector<1x32xf32>
    %175 = math.tanh %174 : vector<1x32xf32>
    %176 = arith.mulf %171, %175 : vector<1x32xf32>
    %177 = arith.truncf %176 : vector<1x32xf32> to vector<1x32xbf16>
    %cst_48 = arith.constant dense<0.000000e+00> : vector<1x128xf32>
    %178 = tpu.matmul %177, %15, %cst_48 {dimension_numbers = #tpu.dot_dimension_numbers<[1], [0], [0], [1], [0, 0, 1, 1], [], []>} : vector<1x32xbf16>, vector<32x128xbf16>, vector<1x128xf32> -> vector<1x128xf32>
    %179 = arith.truncf %155 : vector<1x32xf32> to vector<1x32xbf16>
    %cst_49 = arith.constant dense<0.000000e+00> : vector<1x128xf32>
    %180 = tpu.matmul %179, %17, %cst_49 {dimension_numbers = #tpu.dot_dimension_numbers<[1], [0], [0], [1], [0, 0, 1, 1], [], []>} : vector<1x32xbf16>, vector<32x128xbf16>, vector<1x128xf32> -> vector<1x128xf32>
    %181 = arith.addf %178, %180 : vector<1x128xf32>
    %182 = arith.addf %181, %19 : vector<1x128xf32>
    %183 = arith.negf %182 : vector<1x128xf32>
    %184 = math.exp %183 : vector<1x128xf32>
    %cst_50 = arith.constant 1.000000e+00 : f32
    %185 = vector.broadcast %cst_50 : f32 to vector<1x128xf32>
    %186 = arith.addf %185, %184 : vector<1x128xf32>
    %187 = arith.divf %185, %186 : vector<1x128xf32>
    %188 = math.tanh %182 : vector<1x128xf32>
    %189 = vector.extract_strided_slice %187 {offsets = [0, 0], sizes = [1, 32], strides = [1, 1]} : vector<1x128xf32> to vector<1x32xf32>
    %190 = vector.extract_strided_slice %187 {offsets = [0, 32], sizes = [1, 32], strides = [1, 1]} : vector<1x128xf32> to vector<1x32xf32>
    %191 = vector.extract_strided_slice %188 {offsets = [0, 64], sizes = [1, 32], strides = [1, 1]} : vector<1x128xf32> to vector<1x32xf32>
    %192 = vector.extract_strided_slice %187 {offsets = [0, 96], sizes = [1, 32], strides = [1, 1]} : vector<1x128xf32> to vector<1x32xf32>
    %193 = arith.mulf %190, %153 : vector<1x32xf32>
    %194 = arith.mulf %189, %191 : vector<1x32xf32>
    %195 = arith.addf %193, %194 : vector<1x32xf32>
    %196 = math.tanh %195 : vector<1x32xf32>
    %197 = arith.mulf %192, %196 : vector<1x32xf32>
    %cst_51 = arith.constant 0.000000e+00 : f32
    %198 = vector.broadcast %cst_51 : f32 to vector<1x32xf32>
    %199 = arith.maximumf %197, %198 : vector<1x32xf32>
    %200 = vector.extract_strided_slice %31 {offsets = [4, 0], sizes = [1, 128], strides = [1, 1]} : vector<8x128xf32> to vector<1x128xf32>
    %201 = arith.truncf %176 : vector<1x32xf32> to vector<1x32xbf16>
    %cst_52 = arith.constant dense<0.000000e+00> : vector<1x128xf32>
    %202 = tpu.matmul %201, %11, %cst_52 {dimension_numbers = #tpu.dot_dimension_numbers<[1], [0], [0], [1], [0, 0, 1, 1], [], []>} : vector<1x32xbf16>, vector<32x128xbf16>, vector<1x128xf32> -> vector<1x128xf32>
    %203 = arith.addf %200, %202 : vector<1x128xf32>
    %204 = arith.negf %203 : vector<1x128xf32>
    %205 = math.exp %204 : vector<1x128xf32>
    %cst_53 = arith.constant 1.000000e+00 : f32
    %206 = vector.broadcast %cst_53 : f32 to vector<1x128xf32>
    %207 = arith.addf %206, %205 : vector<1x128xf32>
    %208 = arith.divf %206, %207 : vector<1x128xf32>
    %209 = math.tanh %203 : vector<1x128xf32>
    %210 = vector.extract_strided_slice %208 {offsets = [0, 0], sizes = [1, 32], strides = [1, 1]} : vector<1x128xf32> to vector<1x32xf32>
    %211 = vector.extract_strided_slice %208 {offsets = [0, 32], sizes = [1, 32], strides = [1, 1]} : vector<1x128xf32> to vector<1x32xf32>
    %212 = vector.extract_strided_slice %209 {offsets = [0, 64], sizes = [1, 32], strides = [1, 1]} : vector<1x128xf32> to vector<1x32xf32>
    %213 = vector.extract_strided_slice %208 {offsets = [0, 96], sizes = [1, 32], strides = [1, 1]} : vector<1x128xf32> to vector<1x32xf32>
    %214 = arith.mulf %211, %174 : vector<1x32xf32>
    %215 = arith.mulf %210, %212 : vector<1x32xf32>
    %216 = arith.addf %214, %215 : vector<1x32xf32>
    %217 = math.tanh %216 : vector<1x32xf32>
    %218 = arith.mulf %213, %217 : vector<1x32xf32>
    %219 = arith.truncf %218 : vector<1x32xf32> to vector<1x32xbf16>
    %cst_54 = arith.constant dense<0.000000e+00> : vector<1x128xf32>
    %220 = tpu.matmul %219, %15, %cst_54 {dimension_numbers = #tpu.dot_dimension_numbers<[1], [0], [0], [1], [0, 0, 1, 1], [], []>} : vector<1x32xbf16>, vector<32x128xbf16>, vector<1x128xf32> -> vector<1x128xf32>
    %221 = arith.truncf %197 : vector<1x32xf32> to vector<1x32xbf16>
    %cst_55 = arith.constant dense<0.000000e+00> : vector<1x128xf32>
    %222 = tpu.matmul %221, %17, %cst_55 {dimension_numbers = #tpu.dot_dimension_numbers<[1], [0], [0], [1], [0, 0, 1, 1], [], []>} : vector<1x32xbf16>, vector<32x128xbf16>, vector<1x128xf32> -> vector<1x128xf32>
    %223 = arith.addf %220, %222 : vector<1x128xf32>
    %224 = arith.addf %223, %19 : vector<1x128xf32>
    %225 = arith.negf %224 : vector<1x128xf32>
    %226 = math.exp %225 : vector<1x128xf32>
    %cst_56 = arith.constant 1.000000e+00 : f32
    %227 = vector.broadcast %cst_56 : f32 to vector<1x128xf32>
    %228 = arith.addf %227, %226 : vector<1x128xf32>
    %229 = arith.divf %227, %228 : vector<1x128xf32>
    %230 = math.tanh %224 : vector<1x128xf32>
    %231 = vector.extract_strided_slice %229 {offsets = [0, 0], sizes = [1, 32], strides = [1, 1]} : vector<1x128xf32> to vector<1x32xf32>
    %232 = vector.extract_strided_slice %229 {offsets = [0, 32], sizes = [1, 32], strides = [1, 1]} : vector<1x128xf32> to vector<1x32xf32>
    %233 = vector.extract_strided_slice %230 {offsets = [0, 64], sizes = [1, 32], strides = [1, 1]} : vector<1x128xf32> to vector<1x32xf32>
    %234 = vector.extract_strided_slice %229 {offsets = [0, 96], sizes = [1, 32], strides = [1, 1]} : vector<1x128xf32> to vector<1x32xf32>
    %235 = arith.mulf %232, %195 : vector<1x32xf32>
    %236 = arith.mulf %231, %233 : vector<1x32xf32>
    %237 = arith.addf %235, %236 : vector<1x32xf32>
    %238 = math.tanh %237 : vector<1x32xf32>
    %239 = arith.mulf %234, %238 : vector<1x32xf32>
    %cst_57 = arith.constant 0.000000e+00 : f32
    %240 = vector.broadcast %cst_57 : f32 to vector<1x32xf32>
    %241 = arith.maximumf %239, %240 : vector<1x32xf32>
    %242 = vector.extract_strided_slice %31 {offsets = [5, 0], sizes = [1, 128], strides = [1, 1]} : vector<8x128xf32> to vector<1x128xf32>
    %243 = arith.truncf %218 : vector<1x32xf32> to vector<1x32xbf16>
    %cst_58 = arith.constant dense<0.000000e+00> : vector<1x128xf32>
    %244 = tpu.matmul %243, %11, %cst_58 {dimension_numbers = #tpu.dot_dimension_numbers<[1], [0], [0], [1], [0, 0, 1, 1], [], []>} : vector<1x32xbf16>, vector<32x128xbf16>, vector<1x128xf32> -> vector<1x128xf32>
    %245 = arith.addf %242, %244 : vector<1x128xf32>
    %246 = arith.negf %245 : vector<1x128xf32>
    %247 = math.exp %246 : vector<1x128xf32>
    %cst_59 = arith.constant 1.000000e+00 : f32
    %248 = vector.broadcast %cst_59 : f32 to vector<1x128xf32>
    %249 = arith.addf %248, %247 : vector<1x128xf32>
    %250 = arith.divf %248, %249 : vector<1x128xf32>
    %251 = math.tanh %245 : vector<1x128xf32>
    %252 = vector.extract_strided_slice %250 {offsets = [0, 0], sizes = [1, 32], strides = [1, 1]} : vector<1x128xf32> to vector<1x32xf32>
    %253 = vector.extract_strided_slice %250 {offsets = [0, 32], sizes = [1, 32], strides = [1, 1]} : vector<1x128xf32> to vector<1x32xf32>
    %254 = vector.extract_strided_slice %251 {offsets = [0, 64], sizes = [1, 32], strides = [1, 1]} : vector<1x128xf32> to vector<1x32xf32>
    %255 = vector.extract_strided_slice %250 {offsets = [0, 96], sizes = [1, 32], strides = [1, 1]} : vector<1x128xf32> to vector<1x32xf32>
    %256 = arith.mulf %253, %216 : vector<1x32xf32>
    %257 = arith.mulf %252, %254 : vector<1x32xf32>
    %258 = arith.addf %256, %257 : vector<1x32xf32>
    %259 = math.tanh %258 : vector<1x32xf32>
    %260 = arith.mulf %255, %259 : vector<1x32xf32>
    %261 = arith.truncf %260 : vector<1x32xf32> to vector<1x32xbf16>
    %cst_60 = arith.constant dense<0.000000e+00> : vector<1x128xf32>
    %262 = tpu.matmul %261, %15, %cst_60 {dimension_numbers = #tpu.dot_dimension_numbers<[1], [0], [0], [1], [0, 0, 1, 1], [], []>} : vector<1x32xbf16>, vector<32x128xbf16>, vector<1x128xf32> -> vector<1x128xf32>
    %263 = arith.truncf %239 : vector<1x32xf32> to vector<1x32xbf16>
    %cst_61 = arith.constant dense<0.000000e+00> : vector<1x128xf32>
    %264 = tpu.matmul %263, %17, %cst_61 {dimension_numbers = #tpu.dot_dimension_numbers<[1], [0], [0], [1], [0, 0, 1, 1], [], []>} : vector<1x32xbf16>, vector<32x128xbf16>, vector<1x128xf32> -> vector<1x128xf32>
    %265 = arith.addf %262, %264 : vector<1x128xf32>
    %266 = arith.addf %265, %19 : vector<1x128xf32>
    %267 = arith.negf %266 : vector<1x128xf32>
    %268 = math.exp %267 : vector<1x128xf32>
    %cst_62 = arith.constant 1.000000e+00 : f32
    %269 = vector.broadcast %cst_62 : f32 to vector<1x128xf32>
    %270 = arith.addf %269, %268 : vector<1x128xf32>
    %271 = arith.divf %269, %270 : vector<1x128xf32>
    %272 = math.tanh %266 : vector<1x128xf32>
    %273 = vector.extract_strided_slice %271 {offsets = [0, 0], sizes = [1, 32], strides = [1, 1]} : vector<1x128xf32> to vector<1x32xf32>
    %274 = vector.extract_strided_slice %271 {offsets = [0, 32], sizes = [1, 32], strides = [1, 1]} : vector<1x128xf32> to vector<1x32xf32>
    %275 = vector.extract_strided_slice %272 {offsets = [0, 64], sizes = [1, 32], strides = [1, 1]} : vector<1x128xf32> to vector<1x32xf32>
    %276 = vector.extract_strided_slice %271 {offsets = [0, 96], sizes = [1, 32], strides = [1, 1]} : vector<1x128xf32> to vector<1x32xf32>
    %277 = arith.mulf %274, %237 : vector<1x32xf32>
    %278 = arith.mulf %273, %275 : vector<1x32xf32>
    %279 = arith.addf %277, %278 : vector<1x32xf32>
    %280 = math.tanh %279 : vector<1x32xf32>
    %281 = arith.mulf %276, %280 : vector<1x32xf32>
    %cst_63 = arith.constant 0.000000e+00 : f32
    %282 = vector.broadcast %cst_63 : f32 to vector<1x32xf32>
    %283 = arith.maximumf %281, %282 : vector<1x32xf32>
    %284 = vector.extract_strided_slice %31 {offsets = [6, 0], sizes = [1, 128], strides = [1, 1]} : vector<8x128xf32> to vector<1x128xf32>
    %285 = arith.truncf %260 : vector<1x32xf32> to vector<1x32xbf16>
    %cst_64 = arith.constant dense<0.000000e+00> : vector<1x128xf32>
    %286 = tpu.matmul %285, %11, %cst_64 {dimension_numbers = #tpu.dot_dimension_numbers<[1], [0], [0], [1], [0, 0, 1, 1], [], []>} : vector<1x32xbf16>, vector<32x128xbf16>, vector<1x128xf32> -> vector<1x128xf32>
    %287 = arith.addf %284, %286 : vector<1x128xf32>
    %288 = arith.negf %287 : vector<1x128xf32>
    %289 = math.exp %288 : vector<1x128xf32>
    %cst_65 = arith.constant 1.000000e+00 : f32
    %290 = vector.broadcast %cst_65 : f32 to vector<1x128xf32>
    %291 = arith.addf %290, %289 : vector<1x128xf32>
    %292 = arith.divf %290, %291 : vector<1x128xf32>
    %293 = math.tanh %287 : vector<1x128xf32>
    %294 = vector.extract_strided_slice %292 {offsets = [0, 0], sizes = [1, 32], strides = [1, 1]} : vector<1x128xf32> to vector<1x32xf32>
    %295 = vector.extract_strided_slice %292 {offsets = [0, 32], sizes = [1, 32], strides = [1, 1]} : vector<1x128xf32> to vector<1x32xf32>
    %296 = vector.extract_strided_slice %293 {offsets = [0, 64], sizes = [1, 32], strides = [1, 1]} : vector<1x128xf32> to vector<1x32xf32>
    %297 = vector.extract_strided_slice %292 {offsets = [0, 96], sizes = [1, 32], strides = [1, 1]} : vector<1x128xf32> to vector<1x32xf32>
    %298 = arith.mulf %295, %258 : vector<1x32xf32>
    %299 = arith.mulf %294, %296 : vector<1x32xf32>
    %300 = arith.addf %298, %299 : vector<1x32xf32>
    %301 = math.tanh %300 : vector<1x32xf32>
    %302 = arith.mulf %297, %301 : vector<1x32xf32>
    %303 = arith.truncf %302 : vector<1x32xf32> to vector<1x32xbf16>
    %cst_66 = arith.constant dense<0.000000e+00> : vector<1x128xf32>
    %304 = tpu.matmul %303, %15, %cst_66 {dimension_numbers = #tpu.dot_dimension_numbers<[1], [0], [0], [1], [0, 0, 1, 1], [], []>} : vector<1x32xbf16>, vector<32x128xbf16>, vector<1x128xf32> -> vector<1x128xf32>
    %305 = arith.truncf %281 : vector<1x32xf32> to vector<1x32xbf16>
    %cst_67 = arith.constant dense<0.000000e+00> : vector<1x128xf32>
    %306 = tpu.matmul %305, %17, %cst_67 {dimension_numbers = #tpu.dot_dimension_numbers<[1], [0], [0], [1], [0, 0, 1, 1], [], []>} : vector<1x32xbf16>, vector<32x128xbf16>, vector<1x128xf32> -> vector<1x128xf32>
    %307 = arith.addf %304, %306 : vector<1x128xf32>
    %308 = arith.addf %307, %19 : vector<1x128xf32>
    %309 = arith.negf %308 : vector<1x128xf32>
    %310 = math.exp %309 : vector<1x128xf32>
    %cst_68 = arith.constant 1.000000e+00 : f32
    %311 = vector.broadcast %cst_68 : f32 to vector<1x128xf32>
    %312 = arith.addf %311, %310 : vector<1x128xf32>
    %313 = arith.divf %311, %312 : vector<1x128xf32>
    %314 = math.tanh %308 : vector<1x128xf32>
    %315 = vector.extract_strided_slice %313 {offsets = [0, 0], sizes = [1, 32], strides = [1, 1]} : vector<1x128xf32> to vector<1x32xf32>
    %316 = vector.extract_strided_slice %313 {offsets = [0, 32], sizes = [1, 32], strides = [1, 1]} : vector<1x128xf32> to vector<1x32xf32>
    %317 = vector.extract_strided_slice %314 {offsets = [0, 64], sizes = [1, 32], strides = [1, 1]} : vector<1x128xf32> to vector<1x32xf32>
    %318 = vector.extract_strided_slice %313 {offsets = [0, 96], sizes = [1, 32], strides = [1, 1]} : vector<1x128xf32> to vector<1x32xf32>
    %319 = arith.mulf %316, %279 : vector<1x32xf32>
    %320 = arith.mulf %315, %317 : vector<1x32xf32>
    %321 = arith.addf %319, %320 : vector<1x32xf32>
    %322 = math.tanh %321 : vector<1x32xf32>
    %323 = arith.mulf %318, %322 : vector<1x32xf32>
    %cst_69 = arith.constant 0.000000e+00 : f32
    %324 = vector.broadcast %cst_69 : f32 to vector<1x32xf32>
    %325 = arith.maximumf %323, %324 : vector<1x32xf32>
    %326 = vector.extract_strided_slice %31 {offsets = [7, 0], sizes = [1, 128], strides = [1, 1]} : vector<8x128xf32> to vector<1x128xf32>
    %327 = arith.truncf %302 : vector<1x32xf32> to vector<1x32xbf16>
    %cst_70 = arith.constant dense<0.000000e+00> : vector<1x128xf32>
    %328 = tpu.matmul %327, %11, %cst_70 {dimension_numbers = #tpu.dot_dimension_numbers<[1], [0], [0], [1], [0, 0, 1, 1], [], []>} : vector<1x32xbf16>, vector<32x128xbf16>, vector<1x128xf32> -> vector<1x128xf32>
    %329 = arith.addf %326, %328 : vector<1x128xf32>
    %330 = arith.negf %329 : vector<1x128xf32>
    %331 = math.exp %330 : vector<1x128xf32>
    %cst_71 = arith.constant 1.000000e+00 : f32
    %332 = vector.broadcast %cst_71 : f32 to vector<1x128xf32>
    %333 = arith.addf %332, %331 : vector<1x128xf32>
    %334 = arith.divf %332, %333 : vector<1x128xf32>
    %335 = math.tanh %329 : vector<1x128xf32>
    %336 = vector.extract_strided_slice %334 {offsets = [0, 0], sizes = [1, 32], strides = [1, 1]} : vector<1x128xf32> to vector<1x32xf32>
    %337 = vector.extract_strided_slice %334 {offsets = [0, 32], sizes = [1, 32], strides = [1, 1]} : vector<1x128xf32> to vector<1x32xf32>
    %338 = vector.extract_strided_slice %335 {offsets = [0, 64], sizes = [1, 32], strides = [1, 1]} : vector<1x128xf32> to vector<1x32xf32>
    %339 = vector.extract_strided_slice %334 {offsets = [0, 96], sizes = [1, 32], strides = [1, 1]} : vector<1x128xf32> to vector<1x32xf32>
    %340 = arith.mulf %337, %300 : vector<1x32xf32>
    %341 = arith.mulf %336, %338 : vector<1x32xf32>
    %342 = arith.addf %340, %341 : vector<1x32xf32>
    %343 = math.tanh %342 : vector<1x32xf32>
    %344 = arith.mulf %339, %343 : vector<1x32xf32>
    %345 = arith.truncf %344 : vector<1x32xf32> to vector<1x32xbf16>
    %cst_72 = arith.constant dense<0.000000e+00> : vector<1x128xf32>
    %346 = tpu.matmul %345, %15, %cst_72 {dimension_numbers = #tpu.dot_dimension_numbers<[1], [0], [0], [1], [0, 0, 1, 1], [], []>} : vector<1x32xbf16>, vector<32x128xbf16>, vector<1x128xf32> -> vector<1x128xf32>
    %347 = arith.truncf %323 : vector<1x32xf32> to vector<1x32xbf16>
    %cst_73 = arith.constant dense<0.000000e+00> : vector<1x128xf32>
    %348 = tpu.matmul %347, %17, %cst_73 {dimension_numbers = #tpu.dot_dimension_numbers<[1], [0], [0], [1], [0, 0, 1, 1], [], []>} : vector<1x32xbf16>, vector<32x128xbf16>, vector<1x128xf32> -> vector<1x128xf32>
    %349 = arith.addf %346, %348 : vector<1x128xf32>
    %350 = arith.addf %349, %19 : vector<1x128xf32>
    %351 = arith.negf %350 : vector<1x128xf32>
    %352 = math.exp %351 : vector<1x128xf32>
    %cst_74 = arith.constant 1.000000e+00 : f32
    %353 = vector.broadcast %cst_74 : f32 to vector<1x128xf32>
    %354 = arith.addf %353, %352 : vector<1x128xf32>
    %355 = arith.divf %353, %354 : vector<1x128xf32>
    %356 = math.tanh %350 : vector<1x128xf32>
    %357 = vector.extract_strided_slice %355 {offsets = [0, 0], sizes = [1, 32], strides = [1, 1]} : vector<1x128xf32> to vector<1x32xf32>
    %358 = vector.extract_strided_slice %355 {offsets = [0, 32], sizes = [1, 32], strides = [1, 1]} : vector<1x128xf32> to vector<1x32xf32>
    %359 = vector.extract_strided_slice %356 {offsets = [0, 64], sizes = [1, 32], strides = [1, 1]} : vector<1x128xf32> to vector<1x32xf32>
    %360 = vector.extract_strided_slice %355 {offsets = [0, 96], sizes = [1, 32], strides = [1, 1]} : vector<1x128xf32> to vector<1x32xf32>
    %361 = arith.mulf %358, %321 : vector<1x32xf32>
    %362 = arith.mulf %357, %359 : vector<1x32xf32>
    %363 = arith.addf %361, %362 : vector<1x32xf32>
    %364 = math.tanh %363 : vector<1x32xf32>
    %365 = arith.mulf %360, %364 : vector<1x32xf32>
    %cst_75 = arith.constant 0.000000e+00 : f32
    %366 = vector.broadcast %cst_75 : f32 to vector<1x32xf32>
    %367 = arith.maximumf %365, %366 : vector<1x32xf32>
    %368 = tpu.concatenate %73, %115, %157, %199, %241, %283, %325, %367 in 0 : vector<1x32xf32>, vector<1x32xf32>, vector<1x32xf32>, vector<1x32xf32>, vector<1x32xf32>, vector<1x32xf32>, vector<1x32xf32>, vector<1x32xf32> -> vector<8x32xf32>
    %369 = arith.index_cast %29 : i32 to index
    %c0_76 = arith.constant 0 : index
    %370 = vector.load %arg8[%369, %c0_76] : memref<8x32xf32, #tpu.memory_space<vmem>>, vector<8x32xf32>
    tpu.vector_store %arg8[%369, %c0_76], %368 {strides = array<i32>} : memref<8x32xf32, #tpu.memory_space<vmem>>, vector<8x32xf32>,
    %c1_i32 = arith.constant 1 : i32
    %c0_77 = arith.constant 0 : index
    %c0_78 = arith.constant 0 : index
    %c0_79 = arith.constant 0 : index
    %371 = vector.load %arg9[%c0_77, %c0_78, %c0_79] : memref<2x1x32xf32, #tpu.memory_space<vmem>>, vector<1x1x32xf32>
    %372 = vector.shape_cast %371 : vector<1x1x32xf32> to vector<1x32xf32>
    %373 = vector.shape_cast %344 : vector<1x32xf32> to vector<1x1x32xf32>
    tpu.vector_store %arg9[%c0_77, %c0_78, %c0_79], %373 {strides = array<i32>} : memref<2x1x32xf32, #tpu.memory_space<vmem>>, vector<1x1x32xf32>,
    %c0_80 = arith.constant 0 : index
    %c0_81 = arith.constant 0 : index
    %c0_82 = arith.constant 0 : index
    %374 = vector.load %arg10[%c0_80, %c0_81, %c0_82] : memref<2x1x32xf32, #tpu.memory_space<vmem>>, vector<1x1x32xf32>
    %375 = vector.shape_cast %374 : vector<1x1x32xf32> to vector<1x32xf32>
    %376 = vector.shape_cast %342 : vector<1x32xf32> to vector<1x1x32xf32>
    tpu.vector_store %arg10[%c0_80, %c0_81, %c0_82], %376 {strides = array<i32>} : memref<2x1x32xf32, #tpu.memory_space<vmem>>, vector<1x1x32xf32>,
    %c1_83 = arith.constant 1 : index
    %c0_84 = arith.constant 0 : index
    %c0_85 = arith.constant 0 : index
    %377 = vector.load %arg9[%c1_83, %c0_84, %c0_85] : memref<2x1x32xf32, #tpu.memory_space<vmem>>, vector<1x1x32xf32>
    %378 = vector.shape_cast %377 : vector<1x1x32xf32> to vector<1x32xf32>
    %379 = vector.shape_cast %365 : vector<1x32xf32> to vector<1x1x32xf32>
    tpu.vector_store %arg9[%c1_83, %c0_84, %c0_85], %379 {strides = array<i32>} : memref<2x1x32xf32, #tpu.memory_space<vmem>>, vector<1x1x32xf32>,
    %c1_86 = arith.constant 1 : index
    %c0_87 = arith.constant 0 : index
    %c0_88 = arith.constant 0 : index
    %380 = vector.load %arg10[%c1_86, %c0_87, %c0_88] : memref<2x1x32xf32, #tpu.memory_space<vmem>>, vector<1x1x32xf32>
    %381 = vector.shape_cast %380 : vector<1x1x32xf32> to vector<1x32xf32>
    %382 = vector.shape_cast %363 : vector<1x32xf32> to vector<1x1x32xf32>
    tpu.vector_store %arg10[%c1_86, %c0_87, %c0_88], %382 {strides = array<i32>} : memref<2x1x32xf32, #tpu.memory_space<vmem>>, vector<1x1x32xf32>,
    return
  }
  func.func @transform_0(%arg0: i32) -> (i32, i32) {
    %c0_i32 = arith.constant 0 : i32
    %c0_i32_0 = arith.constant 0 : i32
    %c0_i32_1 = arith.constant 0 : i32
    return %c0_i32, %c0_i32_0 : i32, i32
  }
  func.func @transform_1(%arg0: i32) -> (i32, i32) {
    %c0_i32 = arith.constant 0 : i32
    %c0_i32_0 = arith.constant 0 : i32
    %c0_i32_1 = arith.constant 0 : i32
    return %c0_i32, %c0_i32_0 : i32, i32
  }
  func.func @transform_2(%arg0: i32) -> (i32, i32) {
    %c0_i32 = arith.constant 0 : i32
    %c0_i32_0 = arith.constant 0 : i32
    %c0_i32_1 = arith.constant 0 : i32
    return %c0_i32, %c0_i32_0 : i32, i32
  }
  func.func @transform_3(%arg0: i32) -> (i32, i32, i32) {
    %c0_i32 = arith.constant 0 : i32
    %c0_i32_0 = arith.constant 0 : i32
    %c0_i32_1 = arith.constant 0 : i32
    %c0_i32_2 = arith.constant 0 : i32
    return %c0_i32, %c0_i32_0, %c0_i32_1 : i32, i32, i32
  }
  func.func @transform_4(%arg0: i32) -> (i32, i32, i32) {
    %c0_i32 = arith.constant 0 : i32
    %c0_i32_0 = arith.constant 0 : i32
    %c0_i32_1 = arith.constant 0 : i32
    %c0_i32_2 = arith.constant 0 : i32
    return %c0_i32, %c0_i32_0, %c0_i32_1 : i32, i32, i32
  }
  func.func @transform_5(%arg0: i32) -> (i32, i32, i32) {
    %c0_i32 = arith.constant 0 : i32
    %c0_i32_0 = arith.constant 0 : i32
    %c0_i32_1 = arith.constant 0 : i32
    %c0_i32_2 = arith.constant 0 : i32
    return %c0_i32, %c0_i32_0, %c0_i32_1 : i32, i32, i32
  }
  func.func @transform_6(%arg0: i32) -> (i32, i32, i32) {
    %c0_i32 = arith.constant 0 : i32
    %c0_i32_0 = arith.constant 0 : i32
    %c0_i32_1 = arith.constant 0 : i32
    %c0_i32_2 = arith.constant 0 : i32
    return %c0_i32, %c0_i32_0, %c0_i32_1 : i32, i32, i32
  }
  func.func @transform_7(%arg0: i32) -> (i32, i32) {
    %c0_i32 = arith.constant 0 : i32
    %c0_i32_0 = arith.constant 0 : i32
    %c0_i32_1 = arith.constant 0 : i32
    return %c0_i32, %c0_i32_0 : i32, i32
  }
  func.func @transform_8(%arg0: i32) -> (i32, i32, i32) {
    %c0_i32 = arith.constant 0 : i32
    %c0_i32_0 = arith.constant 0 : i32
    %c0_i32_1 = arith.constant 0 : i32
    %c0_i32_2 = arith.constant 0 : i32
    return %c0_i32, %c0_i32_0, %c0_i32_1 : i32, i32, i32
  }
  func.func @transform_9(%arg0: i32) -> (i32, i32, i32) {
    %c0_i32 = arith.constant 0 : i32
    %c0_i32_0 = arith.constant 0 : i32
    %c0_i32_1 = arith.constant 0 : i32
    %c0_i32_2 = arith.constant 0 : i32
    return %c0_i32, %c0_i32_0, %c0_i32_1 : i32, i32, i32
  }
}

</mosaic_0001>

<llo_original>
// kernel: encoder_forward.1
$region0: #{encoder_forward.1}
  #allocation0 [shape = 'u32[]', space=smem, size = 0x4, offset = 0x4, fixed_abs, tag = 'smem constant byte address 0x4 - core index']
  #allocation1 [shape = 'u32[144,128]{1,0:T(1,128)}', space=vmem, size = 0x12000, scoped, tag = 'internal scratch']
  #allocation2 [shape = 'f32[8,128]{1,0:T(8,128)}', space=vmem, size = 0x1000, scoped, tag = 'scratch operand']
  %s0 = inlined_call_operand.vmem [shape: f32[8,128], index: 0, kind: input, shape index: {}]
  %s1 = inlined_call_operand.hbm [shape: f32[128,128], index: 1, kind: input, shape index: {}]
  %s2 = inlined_call_operand.hbm [shape: f32[32,128], index: 2, kind: input, shape index: {}]
  %s3 = inlined_call_operand.hbm [shape: f32[1,64,128], index: 3, kind: input, shape index: {}]
  %s4 = inlined_call_operand.hbm [shape: f32[2,1,128], index: 4, kind: input, shape index: {}]
  %s5 = inlined_call_operand.hbm [shape: f32[2,1,32], index: 5, kind: input, shape index: {}]
  %s6 = inlined_call_operand.hbm [shape: f32[2,1,32], index: 6, kind: input, shape index: {}]
  %s7 = inlined_call_operand.hbm [shape: f32[8,32], index: 7, kind: output, shape index: {0}]
  %s8 = inlined_call_operand.hbm [shape: f32[2,1,32], index: 8, kind: output, shape index: {1}]
  %s9 = inlined_call_operand.hbm [shape: f32[2,1,32], index: 9, kind: output, shape index: {2}]
  %10 = xla_tuple %s7, %s8, %s9
  %s11 = sld [smem:[#allocation0]]
  $region78: #{encoder_forward.1} parent=0
    _
  %s13 = ssub.s32 1, %s11
  %s14 = scalar_select 0, %s13, %s11
  $region1: #{encoder_forward.1} parent=0
    #allocation3 [shape = 'u8[65536]{0}', space=vmem, size = 0x10000, scoped, tag = 'input window, operand 1, single buffered']
    #allocation4 [shape = 's32[1]{0}', space=sflag, size = 0x4, scoped, tag = 'scoped memory for encoder_forward.1']
    #allocation5 [shape = 's32[1]{0}', space=sflag, size = 0x4, scoped, tag = 'scoped memory for encoder_forward.1']
    #allocation6 [shape = 'u8[16384]{0}', space=vmem, size = 0x4000, scoped, tag = 'input window, operand 2, single buffered']
    #allocation7 [shape = 's32[1]{0}', space=sflag, size = 0x4, scoped, tag = 'scoped memory for encoder_forward.1']
    #allocation8 [shape = 'u8[32768]{0}', space=vmem, size = 0x8000, scoped, tag = 'input window, operand 3, single buffered']
    #allocation9 [shape = 'u8[1024]{0}', space=vmem, size = 0x400, scoped, tag = 'input window, operand 4, single buffered']
    #allocation10 [shape = 's32[1]{0}', space=sflag, size = 0x4, scoped, tag = 'scoped memory for encoder_forward.1']
    #allocation11 [shape = 'u8[1024]{0}', space=vmem, size = 0x400, scoped, tag = 'input window, operand 5, single buffered']
    #allocation12 [shape = 'u8[1024]{0}', space=vmem, size = 0x400, scoped, tag = 'input window, operand 6, single buffered']
    #allocation13 [shape = 's32[1]{0}', space=sflag, size = 0x4, scoped, tag = 'scoped memory for encoder_forward.1']
    #allocation14 [shape = 'u8[4096]{0}', space=vmem, size = 0x1000, scoped, tag = 'output window, operand 0, single buffered']
    #allocation15 [shape = 'u8[1024]{0}', space=vmem, size = 0x400, scoped, tag = 'output window, operand 1, single buffered']
    #allocation16 [shape = 's32[1]{0}', space=sflag, size = 0x4, scoped, tag = 'scoped memory for encoder_forward.1']
    #allocation17 [shape = 'u8[1024]{0}', space=vmem, size = 0x400, scoped, tag = 'output window, operand 2, single buffered']
    %15 = vsyncpa [#allocation4], 0
    %16 = vsyncpa [#allocation7], 0
    %17 = vsyncpa [#allocation10], 0
    %18 = vsyncpa [#allocation13], 0
    %19 = vsyncpa [#allocation5], 0
    %20 = vsyncpa [#allocation16], 0
    // Predicated region
    $region2: #{encoder_forward.1} parent=1 // pred_check
      _
    $region3: #{encoder_forward.1} parent=1 // pred_check_branch
      %22 = sbr.rel (0) target = $region5
    $region4: #{encoder_forward.1} parent=1 // pred_region
      _
    $region5: #{encoder_forward.1} parent=1 // pred_fallthru
      _
    // Predicated region
    $region6: #{encoder_forward.1} parent=1 // pred_check
      _
    $region7: #{encoder_forward.1} parent=1 // pred_check_branch
      %24 = sbr.rel (0) target = $region9
    $region8: #{encoder_forward.1} parent=1 // pred_region
      %s26 = ssub.s32 2048, 2048
      %27 = vsyncadd [#allocation4], %s26
      %s28 = sshll.u32 [#allocation3], 4
      %s29 = int_to_ptr.vmem [resolvable:$true] %s28
      %34 = dma.hbm_to_vmem [thread:$0]  %s1, 2048, %s29, [#allocation4], 128, 128, 8
    $region9: #{encoder_forward.1} parent=1 // pred_fallthru
      _
    // Predicated region
    $region10: #{encoder_forward.1} parent=1 // pred_check
      _
    $region11: #{encoder_forward.1} parent=1 // pred_check_branch
      %36 = sbr.rel (0) target = $region13
    $region12: #{encoder_forward.1} parent=1 // pred_region
      %s38 = ssub.s32 512, 512
      %39 = vsyncadd [#allocation7], %s38
      %s40 = sshll.u32 [#allocation6], 4
      %s41 = int_to_ptr.vmem [resolvable:$true] %s40
      %46 = dma.hbm_to_vmem [thread:$0]  %s2, 512, %s41, [#allocation7], 128, 128, 8
    $region13: #{encoder_forward.1} parent=1 // pred_fallthru
      _
    // Predicated region
    $region14: #{encoder_forward.1} parent=1 // pred_check
      _
    $region15: #{encoder_forward.1} parent=1 // pred_check_branch
      %48 = sbr.rel (0) target = $region17
    $region16: #{encoder_forward.1} parent=1 // pred_region
      %s50 = ssub.s32 1024, 1024
      %51 = vsyncadd [#allocation7], %s50
      %s52 = sshll.u32 [#allocation8], 4
      %s53 = int_to_ptr.vmem [resolvable:$true] %s52
      %58 = dma.hbm_to_vmem [thread:$0]  %s3, 1024, %s53, [#allocation7], 128, 128, 8
    $region17: #{encoder_forward.1} parent=1 // pred_fallthru
      _
    // Predicated region
    $region18: #{encoder_forward.1} parent=1 // pred_check
      _
    $region19: #{encoder_forward.1} parent=1 // pred_check_branch
      %60 = sbr.rel (0) target = $region21
    $region20: #{encoder_forward.1} parent=1 // pred_region
      %s62 = ssub.s32 32, 32
      %63 = vsyncadd [#allocation10], %s62
      %s64 = sshll.u32 [#allocation9], 4
      %s65 = int_to_ptr.vmem [resolvable:$true] %s64
      %70 = dma.hbm_to_vmem [thread:$0]  %s4, 32, %s65, [#allocation10], 16, 16, 1
    $region21: #{encoder_forward.1} parent=1 // pred_fallthru
      _
    // Predicated region
    $region22: #{encoder_forward.1} parent=1 // pred_check
      _
    $region23: #{encoder_forward.1} parent=1 // pred_check_branch
      %72 = sbr.rel (0) target = $region25
    $region24: #{encoder_forward.1} parent=1 // pred_region
      %s74 = ssub.s32 32, 32
      %75 = vsyncadd [#allocation10], %s74
      %s76 = sshll.u32 [#allocation11], 4
      %s77 = int_to_ptr.vmem [resolvable:$true] %s76
      %82 = dma.hbm_to_vmem [thread:$0]  %s5, 32, %s77, [#allocation10], 16, 16, 1
    $region25: #{encoder_forward.1} parent=1 // pred_fallthru
      _
    // Predicated region
    $region26: #{encoder_forward.1} parent=1 // pred_check
      _
    $region27: #{encoder_forward.1} parent=1 // pred_check_branch
      %84 = sbr.rel (0) target = $region29
    $region28: #{encoder_forward.1} parent=1 // pred_region
      %s86 = ssub.s32 32, 32
      %87 = vsyncadd [#allocation13], %s86
      %s88 = sshll.u32 [#allocation12], 4
      %s89 = int_to_ptr.vmem [resolvable:$true] %s88
      %94 = dma.hbm_to_vmem [thread:$0]  %s6, 32, %s89, [#allocation13], 16, 16, 1
    $region29: #{encoder_forward.1} parent=1 // pred_fallthru
      _
    // Predicated region
    $region30: #{encoder_forward.1} parent=1 // pred_check
      _
    $region31: #{encoder_forward.1} parent=1 // pred_check_branch
      %96 = sbr.rel (0) target = $region33
    $region32: #{encoder_forward.1} parent=1 // pred_region
      %97 = dma.done [#allocation4], 2048
    $region33: #{encoder_forward.1} parent=1 // pred_fallthru
      _
    // Predicated region
    $region34: #{encoder_forward.1} parent=1 // pred_check
      _
    $region35: #{encoder_forward.1} parent=1 // pred_check_branch
      %99 = sbr.rel (0) target = $region37
    $region36: #{encoder_forward.1} parent=1 // pred_region
      %100 = dma.done [#allocation7], 512
    $region37: #{encoder_forward.1} parent=1 // pred_fallthru
      _
    // Predicated region
    $region38: #{encoder_forward.1} parent=1 // pred_check
      _
    $region39: #{encoder_forward.1} parent=1 // pred_check_branch
      %102 = sbr.rel (0) target = $region41
    $region40: #{encoder_forward.1} parent=1 // pred_region
      %103 = dma.done [#allocation7], 1024
    $region41: #{encoder_forward.1} parent=1 // pred_fallthru
      _
    // Predicated region
    $region42: #{encoder_forward.1} parent=1 // pred_check
      _
    $region43: #{encoder_forward.1} parent=1 // pred_check_branch
      %105 = sbr.rel (0) target = $region45
    $region44: #{encoder_forward.1} parent=1 // pred_region
      %106 = dma.done [#allocation10], 32
    $region45: #{encoder_forward.1} parent=1 // pred_fallthru
      _
    // Predicated region
    $region46: #{encoder_forward.1} parent=1 // pred_check
      _
    $region47: #{encoder_forward.1} parent=1 // pred_check_branch
      %108 = sbr.rel (0) target = $region49
    $region48: #{encoder_forward.1} parent=1 // pred_region
      %109 = dma.done [#allocation10], 32
    $region49: #{encoder_forward.1} parent=1 // pred_fallthru
      _
    // Predicated region
    $region50: #{encoder_forward.1} parent=1 // pred_check
      _
    $region51: #{encoder_forward.1} parent=1 // pred_check_branch
      %111 = sbr.rel (0) target = $region53
    $region52: #{encoder_forward.1} parent=1 // pred_region
      %112 = dma.done [#allocation13], 32
    $region53: #{encoder_forward.1} parent=1 // pred_fallthru
      _
    %v114 = vld [vmem:[%s0] sm:$0xff]
    %v115 = vpack.c.bf16 %v114, %v114
    %v116 = vld [vmem:[#allocation3] sm:$0xff]
    %v117 = vld [vmem:[#allocation3 + $0x8] sm:$0xff]
    %v118 = vld [vmem:[#allocation3 + $0x10] sm:$0xff]
    %v119 = vld [vmem:[#allocation3 + $0x18] sm:$0xff]
    %v120 = vld [vmem:[#allocation3 + $0x20] sm:$0xff]
    %v121 = vld [vmem:[#allocation3 + $0x28] sm:$0xff]
    %v122 = vld [vmem:[#allocation3 + $0x30] sm:$0xff]
    %v123 = vld [vmem:[#allocation3 + $0x38] sm:$0xff]
    %v124 = vld [vmem:[#allocation3 + $0x40] sm:$0xff]
    %v125 = vld [vmem:[#allocation3 + $0x48] sm:$0xff]
    %v126 = vld [vmem:[#allocation3 + $0x50] sm:$0xff]
    %v127 = vld [vmem:[#allocation3 + $0x58] sm:$0xff]
    %v128 = vld [vmem:[#allocation3 + $0x60] sm:$0xff]
    %v129 = vld [vmem:[#allocation3 + $0x68] sm:$0xff]
    %v130 = vld [vmem:[#allocation3 + $0x70] sm:$0xff]
    %v131 = vld [vmem:[#allocation3 + $0x78] sm:$0xff]
    %v132 = vpack.c.bf16 %v117, %v116
    %v133 = vpack.c.bf16 %v119, %v118
    %v134 = vpack.c.bf16 %v121, %v120
    %v135 = vpack.c.bf16 %v123, %v122
    %v136 = vpack.c.bf16 %v125, %v124
    %v137 = vpack.c.bf16 %v127, %v126
    %v138 = vpack.c.bf16 %v129, %v128
    %v139 = vpack.c.bf16 %v131, %v130
    %v140 = vld [vmem:[#allocation9] sm:$0x1]
    %v142 = vlaneseq
    %v143 = vshrl.u32 %v142, 7
    %v144 = vsub.s32 0, %v143
    %v145 = vrot.slane %v140, %v144
    %147 = vmatprep.subr.bf16.mxu0 0
    %148 = vmatpush1.bf16.msra.mxu0 %v132
    %149 = vmatprep.subr.bf16.mxu0 0
    %150 = vmatpush1.bf16.msra.mxu0 %v133
    %151 = vmatprep.subr.bf16.mxu0 0
    %152 = vmatpush1.bf16.msra.mxu0 %v134
    %153 = vmatprep.subr.bf16.mxu0 0
    %154 = vmatpush1.bf16.msra.mxu0 %v135
    %155 = vmatprep.subr.bf16.mxu0 0
    %156 = vmatpush1.bf16.msra.mxu0 %v136
    %157 = vmatprep.subr.bf16.mxu0 0
    %158 = vmatpush1.bf16.msra.mxu0 %v137
    %159 = vmatprep.subr.bf16.mxu0 0
    %160 = vmatpush1.bf16.msra.mxu0 %v138
    %161 = vmatprep.subr.bf16.mxu0 0
    %162 = vmatpush1.bf16.msra.mxu0 %v139
    %163 = vmatprep.subr.bf16.mxu0 0
    %164 = vmatpush1.bf16.msra.mxu0 0
    %165 = vmatprep.subr.bf16.mxu0 0
    %166 = vmatpush1.bf16.msra.mxu0 0
    %167 = vmatprep.subr.bf16.mxu0 0
    %168 = vmatpush1.bf16.msra.mxu0 0
    %169 = vmatprep.subr.bf16.mxu0 0
    %170 = vmatpush1.bf16.msra.mxu0 0
    %171 = vmatprep.subr.bf16.mxu0 0
    %172 = vmatpush1.bf16.msra.mxu0 0
    %173 = vmatprep.subr.bf16.mxu0 0
    %174 = vmatpush1.bf16.msra.mxu0 0
    %175 = vmatprep.subr.bf16.mxu0 0
    %176 = vmatpush1.bf16.msra.mxu0 0
    %177 = vmatprep.subr.bf16.mxu0 0
    %178 = vmatpush1.bf16.msra.mxu0 0
    %179 = vmatprep.mubr.bf16.mxu0 0
    %180 = vmatmul.mubr.bf16.gmra.mrb[0].mxu0 %v115
    %v181 = vpop.f32.mrb[0].mxu0
    %v182 = vadd.f32 %v145, %v181
    %v183 = vpop.f32.mrb[0].mxu0
    %v184 = vpop.f32.mrb[0].mxu0
    %v185 = vpop.f32.mrb[0].mxu0
    %186 = vdwg.mxu0
    %187 = vst [vmem:[#allocation2] sm:$0xff] %v182
    %v188 = vld [vmem:[#allocation6] sm:$0xff]
    %v189 = vld [vmem:[#allocation6 + $0x8] sm:$0xff]
    %v190 = vld [vmem:[#allocation6 + $0x10] sm:$0xff]
    %v191 = vld [vmem:[#allocation6 + $0x18] sm:$0xff]
    %v192 = vpack.c.bf16 %v189, %v188
    %v193 = vpack.c.bf16 %v191, %v190
    %v194 = vld [vmem:[#allocation8] sm:$0xff]
    %v195 = vld [vmem:[#allocation8 + $0x8] sm:$0xff]
    %v196 = vld [vmem:[#allocation8 + $0x10] sm:$0xff]
    %v197 = vld [vmem:[#allocation8 + $0x18] sm:$0xff]
    %v198 = vld [vmem:[#allocation8 + $0x20] sm:$0xff]
    %v199 = vld [vmem:[#allocation8 + $0x28] sm:$0xff]
    %v200 = vld [vmem:[#allocation8 + $0x30] sm:$0xff]
    %v201 = vld [vmem:[#allocation8 + $0x38] sm:$0xff]
    %v202 = vpack.c.bf16 %v195, %v194
    %v203 = vpack.c.bf16 %v197, %v196
    %v204 = vpack.c.bf16 %v199, %v198
    %v205 = vpack.c.bf16 %v201, %v200
    %s206 = scalar_lea.vmem [#allocation9], 1
    %v207 = vld [vmem:[%s206] sm:$0x1]
    %v208 = vld [vmem:[#allocation11] sm:$0x1]
    %s209 = scalar_lea.vmem [#allocation11], 1
    %v210 = vld [vmem:[%s209] sm:$0x1]
    %v211 = vld [vmem:[#allocation12] sm:$0x1]
    %s212 = scalar_lea.vmem [#allocation12], 1
    %v213 = vld [vmem:[%s212] sm:$0x1]
    %v214 = vld [vmem:[#allocation2] sm:$0xff]
    %v215 = vpack.c.bf16 %v208, %v208
    %vm216 = vcmask 261120
    %v218 = vsel %vm216, %v215, 0
    %220 = vmatprep.subr.bf16.mxu0 0
    %221 = vmatpush1.bf16.msra.mxu0 %v192
    %222 = vmatprep.subr.bf16.mxu0 0
    %223 = vmatpush1.bf16.msra.mxu0 %v193
    %224 = vmatprep.subr.bf16.mxu0 0
    %225 = vmatpush1.bf16.msra.mxu0 0
    %226 = vmatprep.subr.bf16.mxu0 0
    %227 = vmatpush1.bf16.msra.mxu0 0
    %228 = vmatprep.subr.bf16.mxu0 0
    %229 = vmatpush1.bf16.msra.mxu0 0
    %230 = vmatprep.subr.bf16.mxu0 0
    %231 = vmatpush1.bf16.msra.mxu0 0
    %232 = vmatprep.subr.bf16.mxu0 0
    %233 = vmatpush1.bf16.msra.mxu0 0
    %234 = vmatprep.subr.bf16.mxu0 0
    %235 = vmatpush1.bf16.msra.mxu0 0
    %236 = vmatprep.subr.bf16.mxu0 0
    %237 = vmatpush1.bf16.msra.mxu0 0
    %238 = vmatprep.subr.bf16.mxu0 0
    %239 = vmatpush1.bf16.msra.mxu0 0
    %240 = vmatprep.subr.bf16.mxu0 0
    %241 = vmatpush1.bf16.msra.mxu0 0
    %242 = vmatprep.subr.bf16.mxu0 0
    %243 = vmatpush1.bf16.msra.mxu0 0
    %244 = vmatprep.subr.bf16.mxu0 0
    %245 = vmatpush1.bf16.msra.mxu0 0
    %246 = vmatprep.subr.bf16.mxu0 0
    %247 = vmatpush1.bf16.msra.mxu0 0
    %248 = vmatprep.subr.bf16.mxu0 0
    %249 = vmatpush1.bf16.msra.mxu0 0
    %250 = vmatprep.subr.bf16.mxu0 0
    %251 = vmatpush1.bf16.msra.mxu0 0
    %252 = vmatprep.mubr.bf16.mxu0 0
    %253 = vmatmul.mubr.bf16.gmra.mrb[0].mxu0 %v218
    %v254 = vpop.f32.mrb[0].mxu0
    %v255 = vadd.f32 0.0, %v254
    %v256 = vpop.f32.mrb[0].mxu0
    %v257 = vpop.f32.mrb[0].mxu0
    %v258 = vpop.f32.mrb[0].mxu0
    %259 = vdwg.mxu0
    %v260 = vadd.f32 %v214, %v255
    %v261 = vxor.u32 %v260, 2147483648
    %v262 = vmul.f32 %v261, 1.442695
    %v263 = vpow.pop %v262
    %v264 = vadd.f32 %v263, 1.0
    %v265 = vrcp.pop %v264
    %v266 = vmul.f32 1.0, %v265
    %v267 = vtanh.pop %v260
    %v269 = vlaneseq
    %v270 = vshrl.u32 %v269, 7
    %v271 = vsub.s32 0, %v270
    %v272 = vrot.slane %v211, %v271
    %273 = vrot.lane.b32.xlu0 %v272, 32
    %v274 = vpop.permute.xlu0 %273
    %v276 = vmul.f32 %v266, %v274
    %278 = vrot.lane.b32.xlu0 %v267, 64
    %v279 = vpop.permute.xlu0 %278
    %v281 = vmul.f32 %v266, %v279
    %283 = vrot.lane.b32.xlu0 %v281, 32
    %v284 = vpop.permute.xlu0 %283
    %v286 = vadd.f32 %v276, %v284
    %v287 = vtanh.pop %v286
    %289 = vrot.lane.b32.xlu0 %v287, 64
    %v290 = vpop.permute.xlu0 %289
    %v292 = vmul.f32 %v266, %v290
    %v293 = vpack.c.bf16 %v292, %v292
    %v294 = vpack.c.bf16 %v210, %v210
    %v296 = vsel %vm216, %v294, 0
    %298 = vmatprep.subr.bf16.mxu0 0
    %299 = vmatpush1.bf16.msra.mxu0 %v204
    %300 = vmatprep.subr.bf16.mxu0 0
    %301 = vmatpush1.bf16.msra.mxu0 %v205
    %302 = vmatprep.subr.bf16.mxu0 0
    %303 = vmatpush1.bf16.msra.mxu0 0
    %304 = vmatprep.subr.bf16.mxu0 0
    %305 = vmatpush1.bf16.msra.mxu0 0
    %306 = vmatprep.subr.bf16.mxu0 0
    %307 = vmatpush1.bf16.msra.mxu0 0
    %308 = vmatprep.subr.bf16.mxu0 0
    %309 = vmatpush1.bf16.msra.mxu0 0
    %310 = vmatprep.subr.bf16.mxu0 0
    %311 = vmatpush1.bf16.msra.mxu0 0
    %312 = vmatprep.subr.bf16.mxu0 0
    %313 = vmatpush1.bf16.msra.mxu0 0
    %314 = vmatprep.subr.bf16.mxu0 0
    %315 = vmatpush1.bf16.msra.mxu0 0
    %316 = vmatprep.subr.bf16.mxu0 0
    %317 = vmatpush1.bf16.msra.mxu0 0
    %318 = vmatprep.subr.bf16.mxu0 0
    %319 = vmatpush1.bf16.msra.mxu0 0
    %320 = vmatprep.subr.bf16.mxu0 0
    %321 = vmatpush1.bf16.msra.mxu0 0
    %322 = vmatprep.subr.bf16.mxu0 0
    %323 = vmatpush1.bf16.msra.mxu0 0
    %324 = vmatprep.subr.bf16.mxu0 0
    %325 = vmatpush1.bf16.msra.mxu0 0
    %326 = vmatprep.subr.bf16.mxu0 0
    %327 = vmatpush1.bf16.msra.mxu0 0
    %328 = vmatprep.subr.bf16.mxu0 0
    %329 = vmatpush1.bf16.msra.mxu0 0
    %330 = vmatprep.mubr.bf16.mxu0 0
    %331 = vmatmul.mubr.bf16.gmra.mrb[0].mxu0 %v296
    %v332 = vpop.f32.mrb[0].mxu0
    %v333 = vadd.f32 0.0, %v332
    %v334 = vpop.f32.mrb[0].mxu0
    %v335 = vpop.f32.mrb[0].mxu0
    %v336 = vpop.f32.mrb[0].mxu0
    %337 = vdwg.mxu0
    %339 = vrot.lane.b32.xlu0 %v293, 32
    %v340 = vpop.permute.xlu0 %339
    %v342 = vsel %vm216, %v340, 0
    %344 = vmatprep.subr.bf16.mxu0 0
    %345 = vmatpush1.bf16.msra.mxu0 %v202
    %346 = vmatprep.subr.bf16.mxu0 0
    %347 = vmatpush1.bf16.msra.mxu0 %v203
    %348 = vmatprep.subr.bf16.mxu0 0
    %349 = vmatpush1.bf16.msra.mxu0 0
    %350 = vmatprep.subr.bf16.mxu0 0
    %351 = vmatpush1.bf16.msra.mxu0 0
    %352 = vmatprep.subr.bf16.mxu0 0
    %353 = vmatpush1.bf16.msra.mxu0 0
    %354 = vmatprep.subr.bf16.mxu0 0
    %355 = vmatpush1.bf16.msra.mxu0 0
    %356 = vmatprep.subr.bf16.mxu0 0
    %357 = vmatpush1.bf16.msra.mxu0 0
    %358 = vmatprep.subr.bf16.mxu0 0
    %359 = vmatpush1.bf16.msra.mxu0 0
    %360 = vmatprep.subr.bf16.mxu0 0
    %361 = vmatpush1.bf16.msra.mxu0 0
    %362 = vmatprep.subr.bf16.mxu0 0
    %363 = vmatpush1.bf16.msra.mxu0 0
    %364 = vmatprep.subr.bf16.mxu0 0
    %365 = vmatpush1.bf16.msra.mxu0 0
    %366 = vmatprep.subr.bf16.mxu0 0
    %367 = vmatpush1.bf16.msra.mxu0 0
    %368 = vmatprep.subr.bf16.mxu0 0
    %369 = vmatpush1.bf16.msra.mxu0 0
    %370 = vmatprep.subr.bf16.mxu0 0
    %371 = vmatpush1.bf16.msra.mxu0 0
    %372 = vmatprep.subr.bf16.mxu0 0
    %373 = vmatpush1.bf16.msra.mxu0 0
    %374 = vmatprep.subr.bf16.mxu0 0
    %375 = vmatpush1.bf16.msra.mxu0 0
    %376 = vmatprep.mubr.bf16.mxu0 0
    %377 = vmatmul.mubr.bf16.gmra.mrb[0].mxu0 %v342
    %v378 = vpop.f32.mrb[0].mxu0
    %v379 = vadd.f32 %v333, %v378
    %v380 = vpop.f32.mrb[0].mxu0
    %v381 = vpop.f32.mrb[0].mxu0
    %v382 = vpop.f32.mrb[0].mxu0
    %383 = vdwg.mxu0
    %v384 = vadd.f32 %v379, %v207
    %v385 = vxor.u32 %v384, 2147483648
    %v386 = vmul.f32 %v385, 1.442695
    %v387 = vpow.pop %v386
    %v388 = vadd.f32 %v387, 1.0
    %v389 = vrcp.pop %v388
    %v390 = vmul.f32 1.0, %v389
    %v391 = vtanh.pop %v384
    %v393 = vlaneseq
    %v394 = vshrl.u32 %v393, 7
    %v395 = vsub.s32 0, %v394
    %v396 = vrot.slane %v213, %v395
    %397 = vrot.lane.b32.xlu0 %v396, 32
    %v398 = vpop.permute.xlu0 %397
    %v400 = vmul.f32 %v390, %v398
    %402 = vrot.lane.b32.xlu0 %v391, 64
    %v403 = vpop.permute.xlu0 %402
    %v405 = vmul.f32 %v390, %v403
    %407 = vrot.lane.b32.xlu0 %v405, 32
    %v408 = vpop.permute.xlu0 %407
    %v410 = vadd.f32 %v400, %v408
    %v411 = vtanh.pop %v410
    %413 = vrot.lane.b32.xlu0 %v411, 64
    %v414 = vpop.permute.xlu0 %413
    %v416 = vmul.f32 %v390, %v414
    %v417 = vmax.f32 %v416, 0.0
    %418 = vmatprep.subr.bf16.mxu0 0
    %419 = vmatpush1.bf16.msra.mxu0 %v192
    %420 = vmatprep.subr.bf16.mxu0 0
    %421 = vmatpush1.bf16.msra.mxu0 %v193
    %422 = vmatprep.subr.bf16.mxu0 0
    %423 = vmatpush1.bf16.msra.mxu0 0
    %424 = vmatprep.subr.bf16.mxu0 0
    %425 = vmatpush1.bf16.msra.mxu0 0
    %426 = vmatprep.subr.bf16.mxu0 0
    %427 = vmatpush1.bf16.msra.mxu0 0
    %428 = vmatprep.subr.bf16.mxu0 0
    %429 = vmatpush1.bf16.msra.mxu0 0
    %430 = vmatprep.subr.bf16.mxu0 0
    %431 = vmatpush1.bf16.msra.mxu0 0
    %432 = vmatprep.subr.bf16.mxu0 0
    %433 = vmatpush1.bf16.msra.mxu0 0
    %434 = vmatprep.subr.bf16.mxu0 0
    %435 = vmatpush1.bf16.msra.mxu0 0
    %436 = vmatprep.subr.bf16.mxu0 0
    %437 = vmatpush1.bf16.msra.mxu0 0
    %438 = vmatprep.subr.bf16.mxu0 0
    %439 = vmatpush1.bf16.msra.mxu0 0
    %440 = vmatprep.subr.bf16.mxu0 0
    %441 = vmatpush1.bf16.msra.mxu0 0
    %442 = vmatprep.subr.bf16.mxu0 0
    %443 = vmatpush1.bf16.msra.mxu0 0
    %444 = vmatprep.subr.bf16.mxu0 0
    %445 = vmatpush1.bf16.msra.mxu0 0
    %446 = vmatprep.subr.bf16.mxu0 0
    %447 = vmatpush1.bf16.msra.mxu0 0
    %448 = vmatprep.subr.bf16.mxu0 0
    %449 = vmatpush1.bf16.msra.mxu0 0
    %450 = vmatprep.mubr.bf16.mxu0 0
    %451 = vmatmul.mubr.bf16.gmra.mrb[0].mxu0 %v342
    %v452 = vpop.f32.mrb[0].mxu0
    %v453 = vadd.f32 0.0, %v452
    %v454 = vpop.f32.mrb[0].mxu0
    %v455 = vpop.f32.mrb[0].mxu0
    %v456 = vpop.f32.mrb[0].mxu0
    %457 = vdwg.mxu0
    %v459 = vrot.slane %v453, 7
    %v461 = vadd.f32 %v214, %v459
    %v462 = vxor.u32 %v461, 2147483648
    %v463 = vmul.f32 %v462, 1.442695
    %v464 = vpow.pop %v463
    %v465 = vadd.f32 %v464, 1.0
    %v466 = vrcp.pop %v465
    %v467 = vmul.f32 1.0, %v466
    %v468 = vtanh.pop %v461
    %v470 = vrot.slane %v286, 7
    %v472 = vmul.f32 %v467, %v470
    %474 = vrot.lane.b32.xlu0 %v468, 64
    %v475 = vpop.permute.xlu0 %474
    %v477 = vmul.f32 %v467, %v475
    %479 = vrot.lane.b32.xlu0 %v477, 32
    %v480 = vpop.permute.xlu0 %479
    %v482 = vadd.f32 %v472, %v480
    %v483 = vtanh.pop %v482
    %485 = vrot.lane.b32.xlu0 %v483, 64
    %v486 = vpop.permute.xlu0 %485
    %v488 = vmul.f32 %v467, %v486
    %v489 = vpack.c.bf16 %v488, %v488
    %v490 = vpack.c.bf16 %v416, %v416
    %492 = vrot.lane.b32.xlu0 %v490, 32
    %v493 = vpop.permute.xlu0 %492
    %v495 = vsel %vm216, %v493, 0
    %497 = vmatprep.subr.bf16.mxu0 0
    %498 = vmatpush1.bf16.msra.mxu0 %v204
    %499 = vmatprep.subr.bf16.mxu0 0
    %500 = vmatpush1.bf16.msra.mxu0 %v205
    %501 = vmatprep.subr.bf16.mxu0 0
    %502 = vmatpush1.bf16.msra.mxu0 0
    %503 = vmatprep.subr.bf16.mxu0 0
    %504 = vmatpush1.bf16.msra.mxu0 0
    %505 = vmatprep.subr.bf16.mxu0 0
    %506 = vmatpush1.bf16.msra.mxu0 0
    %507 = vmatprep.subr.bf16.mxu0 0
    %508 = vmatpush1.bf16.msra.mxu0 0
    %509 = vmatprep.subr.bf16.mxu0 0
    %510 = vmatpush1.bf16.msra.mxu0 0
    %511 = vmatprep.subr.bf16.mxu0 0
    %512 = vmatpush1.bf16.msra.mxu0 0
    %513 = vmatprep.subr.bf16.mxu0 0
    %514 = vmatpush1.bf16.msra.mxu0 0
    %515 = vmatprep.subr.bf16.mxu0 0
    %516 = vmatpush1.bf16.msra.mxu0 0
    %517 = vmatprep.subr.bf16.mxu0 0
    %518 = vmatpush1.bf16.msra.mxu0 0
    %519 = vmatprep.subr.bf16.mxu0 0
    %520 = vmatpush1.bf16.msra.mxu0 0
    %521 = vmatprep.subr.bf16.mxu0 0
    %522 = vmatpush1.bf16.msra.mxu0 0
    %523 = vmatprep.subr.bf16.mxu0 0
    %524 = vmatpush1.bf16.msra.mxu0 0
    %525 = vmatprep.subr.bf16.mxu0 0
    %526 = vmatpush1.bf16.msra.mxu0 0
    %527 = vmatprep.subr.bf16.mxu0 0
    %528 = vmatpush1.bf16.msra.mxu0 0
    %529 = vmatprep.mubr.bf16.mxu0 0
    %530 = vmatmul.mubr.bf16.gmra.mrb[0].mxu0 %v495
    %v531 = vpop.f32.mrb[0].mxu0
    %v532 = vadd.f32 0.0, %v531
    %v533 = vpop.f32.mrb[0].mxu0
    %v534 = vpop.f32.mrb[0].mxu0
    %v535 = vpop.f32.mrb[0].mxu0
    %536 = vdwg.mxu0
    %v538 = vshrl.u32 %v489, 16
    %540 = vrot.lane.b32.xlu0 %v538, 32
    %v541 = vpop.permute.xlu0 %540
    %v543 = vsel %vm216, %v541, 0
    %545 = vmatprep.subr.bf16.mxu0 0
    %546 = vmatpush1.bf16.msra.mxu0 %v202
    %547 = vmatprep.subr.bf16.mxu0 0
    %548 = vmatpush1.bf16.msra.mxu0 %v203
    %549 = vmatprep.subr.bf16.mxu0 0
    %550 = vmatpush1.bf16.msra.mxu0 0
    %551 = vmatprep.subr.bf16.mxu0 0
    %552 = vmatpush1.bf16.msra.mxu0 0
    %553 = vmatprep.subr.bf16.mxu0 0
    %554 = vmatpush1.bf16.msra.mxu0 0
    %555 = vmatprep.subr.bf16.mxu0 0
    %556 = vmatpush1.bf16.msra.mxu0 0
    %557 = vmatprep.subr.bf16.mxu0 0
    %558 = vmatpush1.bf16.msra.mxu0 0
    %559 = vmatprep.subr.bf16.mxu0 0
    %560 = vmatpush1.bf16.msra.mxu0 0
    %561 = vmatprep.subr.bf16.mxu0 0
    %562 = vmatpush1.bf16.msra.mxu0 0
    %563 = vmatprep.subr.bf16.mxu0 0
    %564 = vmatpush1.bf16.msra.mxu0 0
    %565 = vmatprep.subr.bf16.mxu0 0
    %566 = vmatpush1.bf16.msra.mxu0 0
    %567 = vmatprep.subr.bf16.mxu0 0
    %568 = vmatpush1.bf16.msra.mxu0 0
    %569 = vmatprep.subr.bf16.mxu0 0
    %570 = vmatpush1.bf16.msra.mxu0 0
    %571 = vmatprep.subr.bf16.mxu0 0
    %572 = vmatpush1.bf16.msra.mxu0 0
    %573 = vmatprep.subr.bf16.mxu0 0
    %574 = vmatpush1.bf16.msra.mxu0 0
    %575 = vmatprep.subr.bf16.mxu0 0
    %576 = vmatpush1.bf16.msra.mxu0 0
    %577 = vmatprep.mubr.bf16.mxu0 0
    %578 = vmatmul.mubr.bf16.gmra.mrb[0].mxu0 %v543
    %v579 = vpop.f32.mrb[0].mxu0
    %v580 = vadd.f32 %v532, %v579
    %v581 = vpop.f32.mrb[0].mxu0
    %v582 = vpop.f32.mrb[0].mxu0
    %v583 = vpop.f32.mrb[0].mxu0
    %584 = vdwg.mxu0
    %v585 = vadd.f32 %v580, %v207
    %v586 = vxor.u32 %v585, 2147483648
    %v587 = vmul.f32 %v586, 1.442695
    %v588 = vpow.pop %v587
    %v589 = vadd.f32 %v588, 1.0
    %v590 = vrcp.pop %v589
    %v591 = vmul.f32 1.0, %v590
    %v592 = vtanh.pop %v585
    %v593 = vmul.f32 %v591, %v410
    %595 = vrot.lane.b32.xlu0 %v592, 64
    %v596 = vpop.permute.xlu0 %595
    %v598 = vmul.f32 %v591, %v596
    %600 = vrot.lane.b32.xlu0 %v598, 32
    %v601 = vpop.permute.xlu0 %600
    %v603 = vadd.f32 %v593, %v601
    %v604 = vtanh.pop %v603
    %606 = vrot.lane.b32.xlu0 %v604, 64
    %v607 = vpop.permute.xlu0 %606
    %v609 = vmul.f32 %v591, %v607
    %v610 = vmax.f32 %v609, 0.0
    %611 = vmatprep.subr.bf16.mxu0 0
    %612 = vmatpush1.bf16.msra.mxu0 %v192
    %613 = vmatprep.subr.bf16.mxu0 0
    %614 = vmatpush1.bf16.msra.mxu0 %v193
    %615 = vmatprep.subr.bf16.mxu0 0
    %616 = vmatpush1.bf16.msra.mxu0 0
    %617 = vmatprep.subr.bf16.mxu0 0
    %618 = vmatpush1.bf16.msra.mxu0 0
    %619 = vmatprep.subr.bf16.mxu0 0
    %620 = vmatpush1.bf16.msra.mxu0 0
    %621 = vmatprep.subr.bf16.mxu0 0
    %622 = vmatpush1.bf16.msra.mxu0 0
    %623 = vmatprep.subr.bf16.mxu0 0
    %624 = vmatpush1.bf16.msra.mxu0 0
    %625 = vmatprep.subr.bf16.mxu0 0
    %626 = vmatpush1.bf16.msra.mxu0 0
    %627 = vmatprep.subr.bf16.mxu0 0
    %628 = vmatpush1.bf16.msra.mxu0 0
    %629 = vmatprep.subr.bf16.mxu0 0
    %630 = vmatpush1.bf16.msra.mxu0 0
    %631 = vmatprep.subr.bf16.mxu0 0
    %632 = vmatpush1.bf16.msra.mxu0 0
    %633 = vmatprep.subr.bf16.mxu0 0
    %634 = vmatpush1.bf16.msra.mxu0 0
    %635 = vmatprep.subr.bf16.mxu0 0
    %636 = vmatpush1.bf16.msra.mxu0 0
    %637 = vmatprep.subr.bf16.mxu0 0
    %638 = vmatpush1.bf16.msra.mxu0 0
    %639 = vmatprep.subr.bf16.mxu0 0
    %640 = vmatpush1.bf16.msra.mxu0 0
    %641 = vmatprep.subr.bf16.mxu0 0
    %642 = vmatpush1.bf16.msra.mxu0 0
    %643 = vmatprep.mubr.bf16.mxu0 0
    %644 = vmatmul.mubr.bf16.gmra.mrb[0].mxu0 %v543
    %v645 = vpop.f32.mrb[0].mxu0
    %v646 = vadd.f32 0.0, %v645
    %v647 = vpop.f32.mrb[0].mxu0
    %v648 = vpop.f32.mrb[0].mxu0
    %v649 = vpop.f32.mrb[0].mxu0
    %650 = vdwg.mxu0
    %v652 = vrot.slane %v646, 6
    %v654 = vadd.f32 %v214, %v652
    %v655 = vxor.u32 %v654, 2147483648
    %v656 = vmul.f32 %v655, 1.442695
    %v657 = vpow.pop %v656
    %v658 = vadd.f32 %v657, 1.0
    %v659 = vrcp.pop %v658
    %v660 = vmul.f32 1.0, %v659
    %v661 = vtanh.pop %v654
    %v663 = vrot.slane %v482, 7
    %v665 = vmul.f32 %v660, %v663
    %667 = vrot.lane.b32.xlu0 %v661, 64
    %v668 = vpop.permute.xlu0 %667
    %v670 = vmul.f32 %v660, %v668
    %672 = vrot.lane.b32.xlu0 %v670, 32
    %v673 = vpop.permute.xlu0 %672
    %v675 = vadd.f32 %v665, %v673
    %v676 = vtanh.pop %v675
    %678 = vrot.lane.b32.xlu0 %v676, 64
    %v679 = vpop.permute.xlu0 %678
    %v681 = vmul.f32 %v660, %v679
    %v682 = vpack.c.bf16 %v681, %v681
    %v683 = vpack.c.bf16 %v609, %v609
    %685 = vrot.lane.b32.xlu0 %v683, 32
    %v686 = vpop.permute.xlu0 %685
    %v688 = vsel %vm216, %v686, 0
    %690 = vmatprep.subr.bf16.mxu0 0
    %691 = vmatpush1.bf16.msra.mxu0 %v204
    %692 = vmatprep.subr.bf16.mxu0 0
    %693 = vmatpush1.bf16.msra.mxu0 %v205
    %694 = vmatprep.subr.bf16.mxu0 0
    %695 = vmatpush1.bf16.msra.mxu0 0
    %696 = vmatprep.subr.bf16.mxu0 0
    %697 = vmatpush1.bf16.msra.mxu0 0
    %698 = vmatprep.subr.bf16.mxu0 0
    %699 = vmatpush1.bf16.msra.mxu0 0
    %700 = vmatprep.subr.bf16.mxu0 0
    %701 = vmatpush1.bf16.msra.mxu0 0
    %702 = vmatprep.subr.bf16.mxu0 0
    %703 = vmatpush1.bf16.msra.mxu0 0
    %704 = vmatprep.subr.bf16.mxu0 0
    %705 = vmatpush1.bf16.msra.mxu0 0
    %706 = vmatprep.subr.bf16.mxu0 0
    %707 = vmatpush1.bf16.msra.mxu0 0
    %708 = vmatprep.subr.bf16.mxu0 0
    %709 = vmatpush1.bf16.msra.mxu0 0
    %710 = vmatprep.subr.bf16.mxu0 0
    %711 = vmatpush1.bf16.msra.mxu0 0
    %712 = vmatprep.subr.bf16.mxu0 0
    %713 = vmatpush1.bf16.msra.mxu0 0
    %714 = vmatprep.subr.bf16.mxu0 0
    %715 = vmatpush1.bf16.msra.mxu0 0
    %716 = vmatprep.subr.bf16.mxu0 0
    %717 = vmatpush1.bf16.msra.mxu0 0
    %718 = vmatprep.subr.bf16.mxu0 0
    %719 = vmatpush1.bf16.msra.mxu0 0
    %720 = vmatprep.subr.bf16.mxu0 0
    %721 = vmatpush1.bf16.msra.mxu0 0
    %722 = vmatprep.mubr.bf16.mxu0 0
    %723 = vmatmul.mubr.bf16.gmra.mrb[0].mxu0 %v688
    %v724 = vpop.f32.mrb[0].mxu0
    %v725 = vadd.f32 0.0, %v724
    %v726 = vpop.f32.mrb[0].mxu0
    %v727 = vpop.f32.mrb[0].mxu0
    %v728 = vpop.f32.mrb[0].mxu0
    %729 = vdwg.mxu0
    %v731 = vrot.slane %v682, 1
    %732 = vrot.lane.b32.xlu0 %v731, 32
    %v733 = vpop.permute.xlu0 %732
    %v735 = vsel %vm216, %v733, 0
    %737 = vmatprep.subr.bf16.mxu0 0
    %738 = vmatpush1.bf16.msra.mxu0 %v202
    %739 = vmatprep.subr.bf16.mxu0 0
    %740 = vmatpush1.bf16.msra.mxu0 %v203
    %741 = vmatprep.subr.bf16.mxu0 0
    %742 = vmatpush1.bf16.msra.mxu0 0
    %743 = vmatprep.subr.bf16.mxu0 0
    %744 = vmatpush1.bf16.msra.mxu0 0
    %745 = vmatprep.subr.bf16.mxu0 0
    %746 = vmatpush1.bf16.msra.mxu0 0
    %747 = vmatprep.subr.bf16.mxu0 0
    %748 = vmatpush1.bf16.msra.mxu0 0
    %749 = vmatprep.subr.bf16.mxu0 0
    %750 = vmatpush1.bf16.msra.mxu0 0
    %751 = vmatprep.subr.bf16.mxu0 0
    %752 = vmatpush1.bf16.msra.mxu0 0
    %753 = vmatprep.subr.bf16.mxu0 0
    %754 = vmatpush1.bf16.msra.mxu0 0
    %755 = vmatprep.subr.bf16.mxu0 0
    %756 = vmatpush1.bf16.msra.mxu0 0
    %757 = vmatprep.subr.bf16.mxu0 0
    %758 = vmatpush1.bf16.msra.mxu0 0
    %759 = vmatprep.subr.bf16.mxu0 0
    %760 = vmatpush1.bf16.msra.mxu0 0
    %761 = vmatprep.subr.bf16.mxu0 0
    %762 = vmatpush1.bf16.msra.mxu0 0
    %763 = vmatprep.subr.bf16.mxu0 0
    %764 = vmatpush1.bf16.msra.mxu0 0
    %765 = vmatprep.subr.bf16.mxu0 0
    %766 = vmatpush1.bf16.msra.mxu0 0
    %767 = vmatprep.subr.bf16.mxu0 0
    %768 = vmatpush1.bf16.msra.mxu0 0
    %769 = vmatprep.mubr.bf16.mxu0 0
    %770 = vmatmul.mubr.bf16.gmra.mrb[0].mxu0 %v735
    %v771 = vpop.f32.mrb[0].mxu0
    %v772 = vadd.f32 %v725, %v771
    %v773 = vpop.f32.mrb[0].mxu0
    %v774 = vpop.f32.mrb[0].mxu0
    %v775 = vpop.f32.mrb[0].mxu0
    %776 = vdwg.mxu0
    %v777 = vadd.f32 %v772, %v207
    %v778 = vxor.u32 %v777, 2147483648
    %v779 = vmul.f32 %v778, 1.442695
    %v780 = vpow.pop %v779
    %v781 = vadd.f32 %v780, 1.0
    %v782 = vrcp.pop %v781
    %v783 = vmul.f32 1.0, %v782
    %v784 = vtanh.pop %v777
    %v785 = vmul.f32 %v783, %v603
    %787 = vrot.lane.b32.xlu0 %v784, 64
    %v788 = vpop.permute.xlu0 %787
    %v790 = vmul.f32 %v783, %v788
    %792 = vrot.lane.b32.xlu0 %v790, 32
    %v793 = vpop.permute.xlu0 %792
    %v795 = vadd.f32 %v785, %v793
    %v796 = vtanh.pop %v795
    %798 = vrot.lane.b32.xlu0 %v796, 64
    %v799 = vpop.permute.xlu0 %798
    %v801 = vmul.f32 %v783, %v799
    %v802 = vmax.f32 %v801, 0.0
    %803 = vmatprep.subr.bf16.mxu0 0
    %804 = vmatpush1.bf16.msra.mxu0 %v192
    %805 = vmatprep.subr.bf16.mxu0 0
    %806 = vmatpush1.bf16.msra.mxu0 %v193
    %807 = vmatprep.subr.bf16.mxu0 0
    %808 = vmatpush1.bf16.msra.mxu0 0
    %809 = vmatprep.subr.bf16.mxu0 0
    %810 = vmatpush1.bf16.msra.mxu0 0
    %811 = vmatprep.subr.bf16.mxu0 0
    %812 = vmatpush1.bf16.msra.mxu0 0
    %813 = vmatprep.subr.bf16.mxu0 0
    %814 = vmatpush1.bf16.msra.mxu0 0
    %815 = vmatprep.subr.bf16.mxu0 0
    %816 = vmatpush1.bf16.msra.mxu0 0
    %817 = vmatprep.subr.bf16.mxu0 0
    %818 = vmatpush1.bf16.msra.mxu0 0
    %819 = vmatprep.subr.bf16.mxu0 0
    %820 = vmatpush1.bf16.msra.mxu0 0
    %821 = vmatprep.subr.bf16.mxu0 0
    %822 = vmatpush1.bf16.msra.mxu0 0
    %823 = vmatprep.subr.bf16.mxu0 0
    %824 = vmatpush1.bf16.msra.mxu0 0
    %825 = vmatprep.subr.bf16.mxu0 0
    %826 = vmatpush1.bf16.msra.mxu0 0
    %827 = vmatprep.subr.bf16.mxu0 0
    %828 = vmatpush1.bf16.msra.mxu0 0
    %829 = vmatprep.subr.bf16.mxu0 0
    %830 = vmatpush1.bf16.msra.mxu0 0
    %831 = vmatprep.subr.bf16.mxu0 0
    %832 = vmatpush1.bf16.msra.mxu0 0
    %833 = vmatprep.subr.bf16.mxu0 0
    %834 = vmatpush1.bf16.msra.mxu0 0
    %835 = vmatprep.mubr.bf16.mxu0 0
    %836 = vmatmul.mubr.bf16.gmra.mrb[0].mxu0 %v735
    %v837 = vpop.f32.mrb[0].mxu0
    %v838 = vadd.f32 0.0, %v837
    %v839 = vpop.f32.mrb[0].mxu0
    %v840 = vpop.f32.mrb[0].mxu0
    %v841 = vpop.f32.mrb[0].mxu0
    %842 = vdwg.mxu0
    %v844 = vrot.slane %v838, 5
    %v846 = vadd.f32 %v214, %v844
    %v847 = vxor.u32 %v846, 2147483648
    %v848 = vmul.f32 %v847, 1.442695
    %v849 = vpow.pop %v848
    %v850 = vadd.f32 %v849, 1.0
    %v851 = vrcp.pop %v850
    %v852 = vmul.f32 1.0, %v851
    %v853 = vtanh.pop %v846
    %v855 = vrot.slane %v675, 7
    %v857 = vmul.f32 %v852, %v855
    %859 = vrot.lane.b32.xlu0 %v853, 64
    %v860 = vpop.permute.xlu0 %859
    %v862 = vmul.f32 %v852, %v860
    %864 = vrot.lane.b32.xlu0 %v862, 32
    %v865 = vpop.permute.xlu0 %864
    %v867 = vadd.f32 %v857, %v865
    %v868 = vtanh.pop %v867
    %870 = vrot.lane.b32.xlu0 %v868, 64
    %v871 = vpop.permute.xlu0 %870
    %v873 = vmul.f32 %v852, %v871
    %v874 = vpack.c.bf16 %v873, %v873
    %v875 = vpack.c.bf16 %v801, %v801
    %877 = vrot.lane.b32.xlu0 %v875, 32
    %v878 = vpop.permute.xlu0 %877
    %v880 = vsel %vm216, %v878, 0
    %882 = vmatprep.subr.bf16.mxu0 0
    %883 = vmatpush1.bf16.msra.mxu0 %v204
    %884 = vmatprep.subr.bf16.mxu0 0
    %885 = vmatpush1.bf16.msra.mxu0 %v205
    %886 = vmatprep.subr.bf16.mxu0 0
    %887 = vmatpush1.bf16.msra.mxu0 0
    %888 = vmatprep.subr.bf16.mxu0 0
    %889 = vmatpush1.bf16.msra.mxu0 0
    %890 = vmatprep.subr.bf16.mxu0 0
    %891 = vmatpush1.bf16.msra.mxu0 0
    %892 = vmatprep.subr.bf16.mxu0 0
    %893 = vmatpush1.bf16.msra.mxu0 0
    %894 = vmatprep.subr.bf16.mxu0 0
    %895 = vmatpush1.bf16.msra.mxu0 0
    %896 = vmatprep.subr.bf16.mxu0 0
    %897 = vmatpush1.bf16.msra.mxu0 0
    %898 = vmatprep.subr.bf16.mxu0 0
    %899 = vmatpush1.bf16.msra.mxu0 0
    %900 = vmatprep.subr.bf16.mxu0 0
    %901 = vmatpush1.bf16.msra.mxu0 0
    %902 = vmatprep.subr.bf16.mxu0 0
    %903 = vmatpush1.bf16.msra.mxu0 0
    %904 = vmatprep.subr.bf16.mxu0 0
    %905 = vmatpush1.bf16.msra.mxu0 0
    %906 = vmatprep.subr.bf16.mxu0 0
    %907 = vmatpush1.bf16.msra.mxu0 0
    %908 = vmatprep.subr.bf16.mxu0 0
    %909 = vmatpush1.bf16.msra.mxu0 0
    %910 = vmatprep.subr.bf16.mxu0 0
    %911 = vmatpush1.bf16.msra.mxu0 0
    %912 = vmatprep.subr.bf16.mxu0 0
    %913 = vmatpush1.bf16.msra.mxu0 0
    %914 = vmatprep.mubr.bf16.mxu0 0
    %915 = vmatmul.mubr.bf16.gmra.mrb[0].mxu0 %v880
    %v916 = vpop.f32.mrb[0].mxu0
    %v917 = vadd.f32 0.0, %v916
    %v918 = vpop.f32.mrb[0].mxu0
    %v919 = vpop.f32.mrb[0].mxu0
    %v920 = vpop.f32.mrb[0].mxu0
    %921 = vdwg.mxu0
    %v923 = vshrl.u32 %v874, 16
    %v925 = vrot.slane %v923, 1
    %926 = vrot.lane.b32.xlu0 %v925, 32
    %v927 = vpop.permute.xlu0 %926
    %v929 = vsel %vm216, %v927, 0
    %931 = vmatprep.subr.bf16.mxu0 0
    %932 = vmatpush1.bf16.msra.mxu0 %v202
    %933 = vmatprep.subr.bf16.mxu0 0
    %934 = vmatpush1.bf16.msra.mxu0 %v203
    %935 = vmatprep.subr.bf16.mxu0 0
    %936 = vmatpush1.bf16.msra.mxu0 0
    %937 = vmatprep.subr.bf16.mxu0 0
    %938 = vmatpush1.bf16.msra.mxu0 0
    %939 = vmatprep.subr.bf16.mxu0 0
    %940 = vmatpush1.bf16.msra.mxu0 0
    %941 = vmatprep.subr.bf16.mxu0 0
    %942 = vmatpush1.bf16.msra.mxu0 0
    %943 = vmatprep.subr.bf16.mxu0 0
    %944 = vmatpush1.bf16.msra.mxu0 0
    %945 = vmatprep.subr.bf16.mxu0 0
    %946 = vmatpush1.bf16.msra.mxu0 0
    %947 = vmatprep.subr.bf16.mxu0 0
    %948 = vmatpush1.bf16.msra.mxu0 0
    %949 = vmatprep.subr.bf16.mxu0 0
    %950 = vmatpush1.bf16.msra.mxu0 0
    %951 = vmatprep.subr.bf16.mxu0 0
    %952 = vmatpush1.bf16.msra.mxu0 0
    %953 = vmatprep.subr.bf16.mxu0 0
    %954 = vmatpush1.bf16.msra.mxu0 0
    %955 = vmatprep.subr.bf16.mxu0 0
    %956 = vmatpush1.bf16.msra.mxu0 0
    %957 = vmatprep.subr.bf16.mxu0 0
    %958 = vmatpush1.bf16.msra.mxu0 0
    %959 = vmatprep.subr.bf16.mxu0 0
    %960 = vmatpush1.bf16.msra.mxu0 0
    %961 = vmatprep.subr.bf16.mxu0 0
    %962 = vmatpush1.bf16.msra.mxu0 0
    %963 = vmatprep.mubr.bf16.mxu0 0
    %964 = vmatmul.mubr.bf16.gmra.mrb[0].mxu0 %v929
    %v965 = vpop.f32.mrb[0].mxu0
    %v966 = vadd.f32 %v917, %v965
    %v967 = vpop.f32.mrb[0].mxu0
    %v968 = vpop.f32.mrb[0].mxu0
    %v969 = vpop.f32.mrb[0].mxu0
    %970 = vdwg.mxu0
    %v971 = vadd.f32 %v966, %v207
    %v972 = vxor.u32 %v971, 2147483648
    %v973 = vmul.f32 %v972, 1.442695
    %v974 = vpow.pop %v973
    %v975 = vadd.f32 %v974, 1.0
    %v976 = vrcp.pop %v975
    %v977 = vmul.f32 1.0, %v976
    %v978 = vtanh.pop %v971
    %v979 = vmul.f32 %v977, %v795
    %981 = vrot.lane.b32.xlu0 %v978, 64
    %v982 = vpop.permute.xlu0 %981
    %v984 = vmul.f32 %v977, %v982
    %986 = vrot.lane.b32.xlu0 %v984, 32
    %v987 = vpop.permute.xlu0 %986
    %v989 = vadd.f32 %v979, %v987
    %v990 = vtanh.pop %v989
    %992 = vrot.lane.b32.xlu0 %v990, 64
    %v993 = vpop.permute.xlu0 %992
    %v995 = vmul.f32 %v977, %v993
    %v996 = vmax.f32 %v995, 0.0
    %997 = vmatprep.subr.bf16.mxu0 0
    %998 = vmatpush1.bf16.msra.mxu0 %v192
    %999 = vmatprep.subr.bf16.mxu0 0
    %1000 = vmatpush1.bf16.msra.mxu0 %v193
    %1001 = vmatprep.subr.bf16.mxu0 0
    %1002 = vmatpush1.bf16.msra.mxu0 0
    %1003 = vmatprep.subr.bf16.mxu0 0
    %1004 = vmatpush1.bf16.msra.mxu0 0
    %1005 = vmatprep.subr.bf16.mxu0 0
    %1006 = vmatpush1.bf16.msra.mxu0 0
    %1007 = vmatprep.subr.bf16.mxu0 0
    %1008 = vmatpush1.bf16.msra.mxu0 0
    %1009 = vmatprep.subr.bf16.mxu0 0
    %1010 = vmatpush1.bf16.msra.mxu0 0
    %1011 = vmatprep.subr.bf16.mxu0 0
    %1012 = vmatpush1.bf16.msra.mxu0 0
    %1013 = vmatprep.subr.bf16.mxu0 0
    %1014 = vmatpush1.bf16.msra.mxu0 0
    %1015 = vmatprep.subr.bf16.mxu0 0
    %1016 = vmatpush1.bf16.msra.mxu0 0
    %1017 = vmatprep.subr.bf16.mxu0 0
    %1018 = vmatpush1.bf16.msra.mxu0 0
    %1019 = vmatprep.subr.bf16.mxu0 0
    %1020 = vmatpush1.bf16.msra.mxu0 0
    %1021 = vmatprep.subr.bf16.mxu0 0
    %1022 = vmatpush1.bf16.msra.mxu0 0
    %1023 = vmatprep.subr.bf16.mxu0 0
    %1024 = vmatpush1.bf16.msra.mxu0 0
    %1025 = vmatprep.subr.bf16.mxu0 0
    %1026 = vmatpush1.bf16.msra.mxu0 0
    %1027 = vmatprep.subr.bf16.mxu0 0
    %1028 = vmatpush1.bf16.msra.mxu0 0
    %1029 = vmatprep.mubr.bf16.mxu0 0
    %1030 = vmatmul.mubr.bf16.gmra.mrb[0].mxu0 %v929
    %v1031 = vpop.f32.mrb[0].mxu0
    %v1032 = vadd.f32 0.0, %v1031
    %v1033 = vpop.f32.mrb[0].mxu0
    %v1034 = vpop.f32.mrb[0].mxu0
    %v1035 = vpop.f32.mrb[0].mxu0
    %1036 = vdwg.mxu0
    %v1038 = vrot.slane %v1032, 4
    %v1040 = vadd.f32 %v214, %v1038
    %v1041 = vxor.u32 %v1040, 2147483648
    %v1042 = vmul.f32 %v1041, 1.442695
    %v1043 = vpow.pop %v1042
    %v1044 = vadd.f32 %v1043, 1.0
    %v1045 = vrcp.pop %v1044
    %v1046 = vmul.f32 1.0, %v1045
    %v1047 = vtanh.pop %v1040
    %v1049 = vrot.slane %v867, 7
    %v1051 = vmul.f32 %v1046, %v1049
    %1053 = vrot.lane.b32.xlu0 %v1047, 64
    %v1054 = vpop.permute.xlu0 %1053
    %v1056 = vmul.f32 %v1046, %v1054
    %1058 = vrot.lane.b32.xlu0 %v1056, 32
    %v1059 = vpop.permute.xlu0 %1058
    %v1061 = vadd.f32 %v1051, %v1059
    %v1062 = vtanh.pop %v1061
    %1064 = vrot.lane.b32.xlu0 %v1062, 64
    %v1065 = vpop.permute.xlu0 %1064
    %v1067 = vmul.f32 %v1046, %v1065
    %v1068 = vpack.c.bf16 %v1067, %v1067
    %v1069 = vpack.c.bf16 %v995, %v995
    %1071 = vrot.lane.b32.xlu0 %v1069, 32
    %v1072 = vpop.permute.xlu0 %1071
    %v1074 = vsel %vm216, %v1072, 0
    %1076 = vmatprep.subr.bf16.mxu0 0
    %1077 = vmatpush1.bf16.msra.mxu0 %v204
    %1078 = vmatprep.subr.bf16.mxu0 0
    %1079 = vmatpush1.bf16.msra.mxu0 %v205
    %1080 = vmatprep.subr.bf16.mxu0 0
    %1081 = vmatpush1.bf16.msra.mxu0 0
    %1082 = vmatprep.subr.bf16.mxu0 0
    %1083 = vmatpush1.bf16.msra.mxu0 0
    %1084 = vmatprep.subr.bf16.mxu0 0
    %1085 = vmatpush1.bf16.msra.mxu0 0
    %1086 = vmatprep.subr.bf16.mxu0 0
    %1087 = vmatpush1.bf16.msra.mxu0 0
    %1088 = vmatprep.subr.bf16.mxu0 0
    %1089 = vmatpush1.bf16.msra.mxu0 0
    %1090 = vmatprep.subr.bf16.mxu0 0
    %1091 = vmatpush1.bf16.msra.mxu0 0
    %1092 = vmatprep.subr.bf16.mxu0 0
    %1093 = vmatpush1.bf16.msra.mxu0 0
    %1094 = vmatprep.subr.bf16.mxu0 0
    %1095 = vmatpush1.bf16.msra.mxu0 0
    %1096 = vmatprep.subr.bf16.mxu0 0
    %1097 = vmatpush1.bf16.msra.mxu0 0
    %1098 = vmatprep.subr.bf16.mxu0 0
    %1099 = vmatpush1.bf16.msra.mxu0 0
    %1100 = vmatprep.subr.bf16.mxu0 0
    %1101 = vmatpush1.bf16.msra.mxu0 0
    %1102 = vmatprep.subr.bf16.mxu0 0
    %1103 = vmatpush1.bf16.msra.mxu0 0
    %1104 = vmatprep.subr.bf16.mxu0 0
    %1105 = vmatpush1.bf16.msra.mxu0 0
    %1106 = vmatprep.subr.bf16.mxu0 0
    %1107 = vmatpush1.bf16.msra.mxu0 0
    %1108 = vmatprep.mubr.bf16.mxu0 0
    %1109 = vmatmul.mubr.bf16.gmra.mrb[0].mxu0 %v1074
    %v1110 = vpop.f32.mrb[0].mxu0
    %v1111 = vadd.f32 0.0, %v1110
    %v1112 = vpop.f32.mrb[0].mxu0
    %v1113 = vpop.f32.mrb[0].mxu0
    %v1114 = vpop.f32.mrb[0].mxu0
    %1115 = vdwg.mxu0
    %v1117 = vrot.slane %v1068, 2
    %1118 = vrot.lane.b32.xlu0 %v1117, 32
    %v1119 = vpop.permute.xlu0 %1118
    %v1121 = vsel %vm216, %v1119, 0
    %1123 = vmatprep.subr.bf16.mxu0 0
    %1124 = vmatpush1.bf16.msra.mxu0 %v202
    %1125 = vmatprep.subr.bf16.mxu0 0
    %1126 = vmatpush1.bf16.msra.mxu0 %v203
    %1127 = vmatprep.subr.bf16.mxu0 0
    %1128 = vmatpush1.bf16.msra.mxu0 0
    %1129 = vmatprep.subr.bf16.mxu0 0
    %1130 = vmatpush1.bf16.msra.mxu0 0
    %1131 = vmatprep.subr.bf16.mxu0 0
    %1132 = vmatpush1.bf16.msra.mxu0 0
    %1133 = vmatprep.subr.bf16.mxu0 0
    %1134 = vmatpush1.bf16.msra.mxu0 0
    %1135 = vmatprep.subr.bf16.mxu0 0
    %1136 = vmatpush1.bf16.msra.mxu0 0
    %1137 = vmatprep.subr.bf16.mxu0 0
    %1138 = vmatpush1.bf16.msra.mxu0 0
    %1139 = vmatprep.subr.bf16.mxu0 0
    %1140 = vmatpush1.bf16.msra.mxu0 0
    %1141 = vmatprep.subr.bf16.mxu0 0
    %1142 = vmatpush1.bf16.msra.mxu0 0
    %1143 = vmatprep.subr.bf16.mxu0 0
    %1144 = vmatpush1.bf16.msra.mxu0 0
    %1145 = vmatprep.subr.bf16.mxu0 0
    %1146 = vmatpush1.bf16.msra.mxu0 0
    %1147 = vmatprep.subr.bf16.mxu0 0
    %1148 = vmatpush1.bf16.msra.mxu0 0
    %1149 = vmatprep.subr.bf16.mxu0 0
    %1150 = vmatpush1.bf16.msra.mxu0 0
    %1151 = vmatprep.subr.bf16.mxu0 0
    %1152 = vmatpush1.bf16.msra.mxu0 0
    %1153 = vmatprep.subr.bf16.mxu0 0
    %1154 = vmatpush1.bf16.msra.mxu0 0
    %1155 = vmatprep.mubr.bf16.mxu0 0
    %1156 = vmatmul.mubr.bf16.gmra.mrb[0].mxu0 %v1121
    %v1157 = vpop.f32.mrb[0].mxu0
    %v1158 = vadd.f32 %v1111, %v1157
    %v1159 = vpop.f32.mrb[0].mxu0
    %v1160 = vpop.f32.mrb[0].mxu0
    %v1161 = vpop.f32.mrb[0].mxu0
    %1162 = vdwg.mxu0
    %v1163 = vadd.f32 %v1158, %v207
    %v1164 = vxor.u32 %v1163, 2147483648
    %v1165 = vmul.f32 %v1164, 1.442695
    %v1166 = vpow.pop %v1165
    %v1167 = vadd.f32 %v1166, 1.0
    %v1168 = vrcp.pop %v1167
    %v1169 = vmul.f32 1.0, %v1168
    %v1170 = vtanh.pop %v1163
    %v1171 = vmul.f32 %v1169, %v989
    %1173 = vrot.lane.b32.xlu0 %v1170, 64
    %v1174 = vpop.permute.xlu0 %1173
    %v1176 = vmul.f32 %v1169, %v1174
    %1178 = vrot.lane.b32.xlu0 %v1176, 32
    %v1179 = vpop.permute.xlu0 %1178
    %v1181 = vadd.f32 %v1171, %v1179
    %v1182 = vtanh.pop %v1181
    %1184 = vrot.lane.b32.xlu0 %v1182, 64
    %v1185 = vpop.permute.xlu0 %1184
    %v1187 = vmul.f32 %v1169, %v1185
    %v1188 = vmax.f32 %v1187, 0.0
    %1189 = vmatprep.subr.bf16.mxu0 0
    %1190 = vmatpush1.bf16.msra.mxu0 %v192
    %1191 = vmatprep.subr.bf16.mxu0 0
    %1192 = vmatpush1.bf16.msra.mxu0 %v193
    %1193 = vmatprep.subr.bf16.mxu0 0
    %1194 = vmatpush1.bf16.msra.mxu0 0
    %1195 = vmatprep.subr.bf16.mxu0 0
    %1196 = vmatpush1.bf16.msra.mxu0 0
    %1197 = vmatprep.subr.bf16.mxu0 0
    %1198 = vmatpush1.bf16.msra.mxu0 0
    %1199 = vmatprep.subr.bf16.mxu0 0
    %1200 = vmatpush1.bf16.msra.mxu0 0
    %1201 = vmatprep.subr.bf16.mxu0 0
    %1202 = vmatpush1.bf16.msra.mxu0 0
    %1203 = vmatprep.subr.bf16.mxu0 0
    %1204 = vmatpush1.bf16.msra.mxu0 0
    %1205 = vmatprep.subr.bf16.mxu0 0
    %1206 = vmatpush1.bf16.msra.mxu0 0
    %1207 = vmatprep.subr.bf16.mxu0 0
    %1208 = vmatpush1.bf16.msra.mxu0 0
    %1209 = vmatprep.subr.bf16.mxu0 0
    %1210 = vmatpush1.bf16.msra.mxu0 0
    %1211 = vmatprep.subr.bf16.mxu0 0
    %1212 = vmatpush1.bf16.msra.mxu0 0
    %1213 = vmatprep.subr.bf16.mxu0 0
    %1214 = vmatpush1.bf16.msra.mxu0 0
    %1215 = vmatprep.subr.bf16.mxu0 0
    %1216 = vmatpush1.bf16.msra.mxu0 0
    %1217 = vmatprep.subr.bf16.mxu0 0
    %1218 = vmatpush1.bf16.msra.mxu0 0
    %1219 = vmatprep.subr.bf16.mxu0 0
    %1220 = vmatpush1.bf16.msra.mxu0 0
    %1221 = vmatprep.mubr.bf16.mxu0 0
    %1222 = vmatmul.mubr.bf16.gmra.mrb[0].mxu0 %v1121
    %v1223 = vpop.f32.mrb[0].mxu0
    %v1224 = vadd.f32 0.0, %v1223
    %v1225 = vpop.f32.mrb[0].mxu0
    %v1226 = vpop.f32.mrb[0].mxu0
    %v1227 = vpop.f32.mrb[0].mxu0
    %1228 = vdwg.mxu0
    %v1230 = vrot.slane %v1224, 3
    %v1232 = vadd.f32 %v214, %v1230
    %v1233 = vxor.u32 %v1232, 2147483648
    %v1234 = vmul.f32 %v1233, 1.442695
    %v1235 = vpow.pop %v1234
    %v1236 = vadd.f32 %v1235, 1.0
    %v1237 = vrcp.pop %v1236
    %v1238 = vmul.f32 1.0, %v1237
    %v1239 = vtanh.pop %v1232
    %v1241 = vrot.slane %v1061, 7
    %v1243 = vmul.f32 %v1238, %v1241
    %1245 = vrot.lane.b32.xlu0 %v1239, 64
    %v1246 = vpop.permute.xlu0 %1245
    %v1248 = vmul.f32 %v1238, %v1246
    %1250 = vrot.lane.b32.xlu0 %v1248, 32
    %v1251 = vpop.permute.xlu0 %1250
    %v1253 = vadd.f32 %v1243, %v1251
    %v1254 = vtanh.pop %v1253
    %1256 = vrot.lane.b32.xlu0 %v1254, 64
    %v1257 = vpop.permute.xlu0 %1256
    %v1259 = vmul.f32 %v1238, %v1257
    %v1260 = vpack.c.bf16 %v1259, %v1259
    %v1261 = vpack.c.bf16 %v1187, %v1187
    %1263 = vrot.lane.b32.xlu0 %v1261, 32
    %v1264 = vpop.permute.xlu0 %1263
    %v1266 = vsel %vm216, %v1264, 0
    %1268 = vmatprep.subr.bf16.mxu0 0
    %1269 = vmatpush1.bf16.msra.mxu0 %v204
    %1270 = vmatprep.subr.bf16.mxu0 0
    %1271 = vmatpush1.bf16.msra.mxu0 %v205
    %1272 = vmatprep.subr.bf16.mxu0 0
    %1273 = vmatpush1.bf16.msra.mxu0 0
    %1274 = vmatprep.subr.bf16.mxu0 0
    %1275 = vmatpush1.bf16.msra.mxu0 0
    %1276 = vmatprep.subr.bf16.mxu0 0
    %1277 = vmatpush1.bf16.msra.mxu0 0
    %1278 = vmatprep.subr.bf16.mxu0 0
    %1279 = vmatpush1.bf16.msra.mxu0 0
    %1280 = vmatprep.subr.bf16.mxu0 0
    %1281 = vmatpush1.bf16.msra.mxu0 0
    %1282 = vmatprep.subr.bf16.mxu0 0
    %1283 = vmatpush1.bf16.msra.mxu0 0
    %1284 = vmatprep.subr.bf16.mxu0 0
    %1285 = vmatpush1.bf16.msra.mxu0 0
    %1286 = vmatprep.subr.bf16.mxu0 0
    %1287 = vmatpush1.bf16.msra.mxu0 0
    %1288 = vmatprep.subr.bf16.mxu0 0
    %1289 = vmatpush1.bf16.msra.mxu0 0
    %1290 = vmatprep.subr.bf16.mxu0 0
    %1291 = vmatpush1.bf16.msra.mxu0 0
    %1292 = vmatprep.subr.bf16.mxu0 0
    %1293 = vmatpush1.bf16.msra.mxu0 0
    %1294 = vmatprep.subr.bf16.mxu0 0
    %1295 = vmatpush1.bf16.msra.mxu0 0
    %1296 = vmatprep.subr.bf16.mxu0 0
    %1297 = vmatpush1.bf16.msra.mxu0 0
    %1298 = vmatprep.subr.bf16.mxu0 0
    %1299 = vmatpush1.bf16.msra.mxu0 0
    %1300 = vmatprep.mubr.bf16.mxu0 0
    %1301 = vmatmul.mubr.bf16.gmra.mrb[0].mxu0 %v1266
    %v1302 = vpop.f32.mrb[0].mxu0
    %v1303 = vadd.f32 0.0, %v1302
    %v1304 = vpop.f32.mrb[0].mxu0
    %v1305 = vpop.f32.mrb[0].mxu0
    %v1306 = vpop.f32.mrb[0].mxu0
    %1307 = vdwg.mxu0
    %v1309 = vshrl.u32 %v1260, 16
    %v1311 = vrot.slane %v1309, 2
    %1312 = vrot.lane.b32.xlu0 %v1311, 32
    %v1313 = vpop.permute.xlu0 %1312
    %v1315 = vsel %vm216, %v1313, 0
    %1317 = vmatprep.subr.bf16.mxu0 0
    %1318 = vmatpush1.bf16.msra.mxu0 %v202
    %1319 = vmatprep.subr.bf16.mxu0 0
    %1320 = vmatpush1.bf16.msra.mxu0 %v203
    %1321 = vmatprep.subr.bf16.mxu0 0
    %1322 = vmatpush1.bf16.msra.mxu0 0
    %1323 = vmatprep.subr.bf16.mxu0 0
    %1324 = vmatpush1.bf16.msra.mxu0 0
    %1325 = vmatprep.subr.bf16.mxu0 0
    %1326 = vmatpush1.bf16.msra.mxu0 0
    %1327 = vmatprep.subr.bf16.mxu0 0
    %1328 = vmatpush1.bf16.msra.mxu0 0
    %1329 = vmatprep.subr.bf16.mxu0 0
    %1330 = vmatpush1.bf16.msra.mxu0 0
    %1331 = vmatprep.subr.bf16.mxu0 0
    %1332 = vmatpush1.bf16.msra.mxu0 0
    %1333 = vmatprep.subr.bf16.mxu0 0
    %1334 = vmatpush1.bf16.msra.mxu0 0
    %1335 = vmatprep.subr.bf16.mxu0 0
    %1336 = vmatpush1.bf16.msra.mxu0 0
    %1337 = vmatprep.subr.bf16.mxu0 0
    %1338 = vmatpush1.bf16.msra.mxu0 0
    %1339 = vmatprep.subr.bf16.mxu0 0
    %1340 = vmatpush1.bf16.msra.mxu0 0
    %1341 = vmatprep.subr.bf16.mxu0 0
    %1342 = vmatpush1.bf16.msra.mxu0 0
    %1343 = vmatprep.subr.bf16.mxu0 0
    %1344 = vmatpush1.bf16.msra.mxu0 0
    %1345 = vmatprep.subr.bf16.mxu0 0
    %1346 = vmatpush1.bf16.msra.mxu0 0
    %1347 = vmatprep.subr.bf16.mxu0 0
    %1348 = vmatpush1.bf16.msra.mxu0 0
    %1349 = vmatprep.mubr.bf16.mxu0 0
    %1350 = vmatmul.mubr.bf16.gmra.mrb[0].mxu0 %v1315
    %v1351 = vpop.f32.mrb[0].mxu0
    %v1352 = vadd.f32 %v1303, %v1351
    %v1353 = vpop.f32.mrb[0].mxu0
    %v1354 = vpop.f32.mrb[0].mxu0
    %v1355 = vpop.f32.mrb[0].mxu0
    %1356 = vdwg.mxu0
    %v1357 = vadd.f32 %v1352, %v207
    %v1358 = vxor.u32 %v1357, 2147483648
    %v1359 = vmul.f32 %v1358, 1.442695
    %v1360 = vpow.pop %v1359
    %v1361 = vadd.f32 %v1360, 1.0
    %v1362 = vrcp.pop %v1361
    %v1363 = vmul.f32 1.0, %v1362
    %v1364 = vtanh.pop %v1357
    %v1365 = vmul.f32 %v1363, %v1181
    %1367 = vrot.lane.b32.xlu0 %v1364, 64
    %v1368 = vpop.permute.xlu0 %1367
    %v1370 = vmul.f32 %v1363, %v1368
    %1372 = vrot.lane.b32.xlu0 %v1370, 32
    %v1373 = vpop.permute.xlu0 %1372
    %v1375 = vadd.f32 %v1365, %v1373
    %v1376 = vtanh.pop %v1375
    %1378 = vrot.lane.b32.xlu0 %v1376, 64
    %v1379 = vpop.permute.xlu0 %1378
    %v1381 = vmul.f32 %v1363, %v1379
    %v1382 = vmax.f32 %v1381, 0.0
    %1383 = vmatprep.subr.bf16.mxu0 0
    %1384 = vmatpush1.bf16.msra.mxu0 %v192
    %1385 = vmatprep.subr.bf16.mxu0 0
    %1386 = vmatpush1.bf16.msra.mxu0 %v193
    %1387 = vmatprep.subr.bf16.mxu0 0
    %1388 = vmatpush1.bf16.msra.mxu0 0
    %1389 = vmatprep.subr.bf16.mxu0 0
    %1390 = vmatpush1.bf16.msra.mxu0 0
    %1391 = vmatprep.subr.bf16.mxu0 0
    %1392 = vmatpush1.bf16.msra.mxu0 0
    %1393 = vmatprep.subr.bf16.mxu0 0
    %1394 = vmatpush1.bf16.msra.mxu0 0
    %1395 = vmatprep.subr.bf16.mxu0 0
    %1396 = vmatpush1.bf16.msra.mxu0 0
    %1397 = vmatprep.subr.bf16.mxu0 0
    %1398 = vmatpush1.bf16.msra.mxu0 0
    %1399 = vmatprep.subr.bf16.mxu0 0
    %1400 = vmatpush1.bf16.msra.mxu0 0
    %1401 = vmatprep.subr.bf16.mxu0 0
    %1402 = vmatpush1.bf16.msra.mxu0 0
    %1403 = vmatprep.subr.bf16.mxu0 0
    %1404 = vmatpush1.bf16.msra.mxu0 0
    %1405 = vmatprep.subr.bf16.mxu0 0
    %1406 = vmatpush1.bf16.msra.mxu0 0
    %1407 = vmatprep.subr.bf16.mxu0 0
    %1408 = vmatpush1.bf16.msra.mxu0 0
    %1409 = vmatprep.subr.bf16.mxu0 0
    %1410 = vmatpush1.bf16.msra.mxu0 0
    %1411 = vmatprep.subr.bf16.mxu0 0
    %1412 = vmatpush1.bf16.msra.mxu0 0
    %1413 = vmatprep.subr.bf16.mxu0 0
    %1414 = vmatpush1.bf16.msra.mxu0 0
    %1415 = vmatprep.mubr.bf16.mxu0 0
    %1416 = vmatmul.mubr.bf16.gmra.mrb[0].mxu0 %v1315
    %v1417 = vpop.f32.mrb[0].mxu0
    %v1418 = vadd.f32 0.0, %v1417
    %v1419 = vpop.f32.mrb[0].mxu0
    %v1420 = vpop.f32.mrb[0].mxu0
    %v1421 = vpop.f32.mrb[0].mxu0
    %1422 = vdwg.mxu0
    %v1424 = vrot.slane %v1418, 2
    %v1426 = vadd.f32 %v214, %v1424
    %v1427 = vxor.u32 %v1426, 2147483648
    %v1428 = vmul.f32 %v1427, 1.442695
    %v1429 = vpow.pop %v1428
    %v1430 = vadd.f32 %v1429, 1.0
    %v1431 = vrcp.pop %v1430
    %v1432 = vmul.f32 1.0, %v1431
    %v1433 = vtanh.pop %v1426
    %v1435 = vrot.slane %v1253, 7
    %v1437 = vmul.f32 %v1432, %v1435
    %1439 = vrot.lane.b32.xlu0 %v1433, 64
    %v1440 = vpop.permute.xlu0 %1439
    %v1442 = vmul.f32 %v1432, %v1440
    %1444 = vrot.lane.b32.xlu0 %v1442, 32
    %v1445 = vpop.permute.xlu0 %1444
    %v1447 = vadd.f32 %v1437, %v1445
    %v1448 = vtanh.pop %v1447
    %1450 = vrot.lane.b32.xlu0 %v1448, 64
    %v1451 = vpop.permute.xlu0 %1450
    %v1453 = vmul.f32 %v1432, %v1451
    %v1454 = vpack.c.bf16 %v1453, %v1453
    %v1455 = vpack.c.bf16 %v1381, %v1381
    %1457 = vrot.lane.b32.xlu0 %v1455, 32
    %v1458 = vpop.permute.xlu0 %1457
    %v1460 = vsel %vm216, %v1458, 0
    %1462 = vmatprep.subr.bf16.mxu0 0
    %1463 = vmatpush1.bf16.msra.mxu0 %v204
    %1464 = vmatprep.subr.bf16.mxu0 0
    %1465 = vmatpush1.bf16.msra.mxu0 %v205
    %1466 = vmatprep.subr.bf16.mxu0 0
    %1467 = vmatpush1.bf16.msra.mxu0 0
    %1468 = vmatprep.subr.bf16.mxu0 0
    %1469 = vmatpush1.bf16.msra.mxu0 0
    %1470 = vmatprep.subr.bf16.mxu0 0
    %1471 = vmatpush1.bf16.msra.mxu0 0
    %1472 = vmatprep.subr.bf16.mxu0 0
    %1473 = vmatpush1.bf16.msra.mxu0 0
    %1474 = vmatprep.subr.bf16.mxu0 0
    %1475 = vmatpush1.bf16.msra.mxu0 0
    %1476 = vmatprep.subr.bf16.mxu0 0
    %1477 = vmatpush1.bf16.msra.mxu0 0
    %1478 = vmatprep.subr.bf16.mxu0 0
    %1479 = vmatpush1.bf16.msra.mxu0 0
    %1480 = vmatprep.subr.bf16.mxu0 0
    %1481 = vmatpush1.bf16.msra.mxu0 0
    %1482 = vmatprep.subr.bf16.mxu0 0
    %1483 = vmatpush1.bf16.msra.mxu0 0
    %1484 = vmatprep.subr.bf16.mxu0 0
    %1485 = vmatpush1.bf16.msra.mxu0 0
    %1486 = vmatprep.subr.bf16.mxu0 0
    %1487 = vmatpush1.bf16.msra.mxu0 0
    %1488 = vmatprep.subr.bf16.mxu0 0
    %1489 = vmatpush1.bf16.msra.mxu0 0
    %1490 = vmatprep.subr.bf16.mxu0 0
    %1491 = vmatpush1.bf16.msra.mxu0 0
    %1492 = vmatprep.subr.bf16.mxu0 0
    %1493 = vmatpush1.bf16.msra.mxu0 0
    %1494 = vmatprep.mubr.bf16.mxu0 0
    %1495 = vmatmul.mubr.bf16.gmra.mrb[0].mxu0 %v1460
    %v1496 = vpop.f32.mrb[0].mxu0
    %v1497 = vadd.f32 0.0, %v1496
    %v1498 = vpop.f32.mrb[0].mxu0
    %v1499 = vpop.f32.mrb[0].mxu0
    %v1500 = vpop.f32.mrb[0].mxu0
    %1501 = vdwg.mxu0
    %v1503 = vrot.slane %v1454, 3
    %1504 = vrot.lane.b32.xlu0 %v1503, 32
    %v1505 = vpop.permute.xlu0 %1504
    %v1507 = vsel %vm216, %v1505, 0
    %1509 = vmatprep.subr.bf16.mxu0 0
    %1510 = vmatpush1.bf16.msra.mxu0 %v202
    %1511 = vmatprep.subr.bf16.mxu0 0
    %1512 = vmatpush1.bf16.msra.mxu0 %v203
    %1513 = vmatprep.subr.bf16.mxu0 0
    %1514 = vmatpush1.bf16.msra.mxu0 0
    %1515 = vmatprep.subr.bf16.mxu0 0
    %1516 = vmatpush1.bf16.msra.mxu0 0
    %1517 = vmatprep.subr.bf16.mxu0 0
    %1518 = vmatpush1.bf16.msra.mxu0 0
    %1519 = vmatprep.subr.bf16.mxu0 0
    %1520 = vmatpush1.bf16.msra.mxu0 0
    %1521 = vmatprep.subr.bf16.mxu0 0
    %1522 = vmatpush1.bf16.msra.mxu0 0
    %1523 = vmatprep.subr.bf16.mxu0 0
    %1524 = vmatpush1.bf16.msra.mxu0 0
    %1525 = vmatprep.subr.bf16.mxu0 0
    %1526 = vmatpush1.bf16.msra.mxu0 0
    %1527 = vmatprep.subr.bf16.mxu0 0
    %1528 = vmatpush1.bf16.msra.mxu0 0
    %1529 = vmatprep.subr.bf16.mxu0 0
    %1530 = vmatpush1.bf16.msra.mxu0 0
    %1531 = vmatprep.subr.bf16.mxu0 0
    %1532 = vmatpush1.bf16.msra.mxu0 0
    %1533 = vmatprep.subr.bf16.mxu0 0
    %1534 = vmatpush1.bf16.msra.mxu0 0
    %1535 = vmatprep.subr.bf16.mxu0 0
    %1536 = vmatpush1.bf16.msra.mxu0 0
    %1537 = vmatprep.subr.bf16.mxu0 0
    %1538 = vmatpush1.bf16.msra.mxu0 0
    %1539 = vmatprep.subr.bf16.mxu0 0
    %1540 = vmatpush1.bf16.msra.mxu0 0
    %1541 = vmatprep.mubr.bf16.mxu0 0
    %1542 = vmatmul.mubr.bf16.gmra.mrb[0].mxu0 %v1507
    %v1543 = vpop.f32.mrb[0].mxu0
    %v1544 = vadd.f32 %v1497, %v1543
    %v1545 = vpop.f32.mrb[0].mxu0
    %v1546 = vpop.f32.mrb[0].mxu0
    %v1547 = vpop.f32.mrb[0].mxu0
    %1548 = vdwg.mxu0
    %v1549 = vadd.f32 %v1544, %v207
    %v1550 = vxor.u32 %v1549, 2147483648
    %v1551 = vmul.f32 %v1550, 1.442695
    %v1552 = vpow.pop %v1551
    %v1553 = vadd.f32 %v1552, 1.0
    %v1554 = vrcp.pop %v1553
    %v1555 = vmul.f32 1.0, %v1554
    %v1556 = vtanh.pop %v1549
    %v1557 = vmul.f32 %v1555, %v1375
    %1559 = vrot.lane.b32.xlu0 %v1556, 64
    %v1560 = vpop.permute.xlu0 %1559
    %v1562 = vmul.f32 %v1555, %v1560
    %1564 = vrot.lane.b32.xlu0 %v1562, 32
    %v1565 = vpop.permute.xlu0 %1564
    %v1567 = vadd.f32 %v1557, %v1565
    %v1568 = vtanh.pop %v1567
    %1570 = vrot.lane.b32.xlu0 %v1568, 64
    %v1571 = vpop.permute.xlu0 %1570
    %v1573 = vmul.f32 %v1555, %v1571
    %v1574 = vmax.f32 %v1573, 0.0
    %1575 = vmatprep.subr.bf16.mxu0 0
    %1576 = vmatpush1.bf16.msra.mxu0 %v192
    %1577 = vmatprep.subr.bf16.mxu0 0
    %1578 = vmatpush1.bf16.msra.mxu0 %v193
    %1579 = vmatprep.subr.bf16.mxu0 0
    %1580 = vmatpush1.bf16.msra.mxu0 0
    %1581 = vmatprep.subr.bf16.mxu0 0
    %1582 = vmatpush1.bf16.msra.mxu0 0
    %1583 = vmatprep.subr.bf16.mxu0 0
    %1584 = vmatpush1.bf16.msra.mxu0 0
    %1585 = vmatprep.subr.bf16.mxu0 0
    %1586 = vmatpush1.bf16.msra.mxu0 0
    %1587 = vmatprep.subr.bf16.mxu0 0
    %1588 = vmatpush1.bf16.msra.mxu0 0
    %1589 = vmatprep.subr.bf16.mxu0 0
    %1590 = vmatpush1.bf16.msra.mxu0 0
    %1591 = vmatprep.subr.bf16.mxu0 0
    %1592 = vmatpush1.bf16.msra.mxu0 0
    %1593 = vmatprep.subr.bf16.mxu0 0
    %1594 = vmatpush1.bf16.msra.mxu0 0
    %1595 = vmatprep.subr.bf16.mxu0 0
    %1596 = vmatpush1.bf16.msra.mxu0 0
    %1597 = vmatprep.subr.bf16.mxu0 0
    %1598 = vmatpush1.bf16.msra.mxu0 0
    %1599 = vmatprep.subr.bf16.mxu0 0
    %1600 = vmatpush1.bf16.msra.mxu0 0
    %1601 = vmatprep.subr.bf16.mxu0 0
    %1602 = vmatpush1.bf16.msra.mxu0 0
    %1603 = vmatprep.subr.bf16.mxu0 0
    %1604 = vmatpush1.bf16.msra.mxu0 0
    %1605 = vmatprep.subr.bf16.mxu0 0
    %1606 = vmatpush1.bf16.msra.mxu0 0
    %1607 = vmatprep.mubr.bf16.mxu0 0
    %1608 = vmatmul.mubr.bf16.gmra.mrb[0].mxu0 %v1507
    %v1609 = vpop.f32.mrb[0].mxu0
    %v1610 = vadd.f32 0.0, %v1609
    %v1611 = vpop.f32.mrb[0].mxu0
    %v1612 = vpop.f32.mrb[0].mxu0
    %v1613 = vpop.f32.mrb[0].mxu0
    %1614 = vdwg.mxu0
    %v1616 = vrot.slane %v1610, 1
    %v1618 = vadd.f32 %v214, %v1616
    %v1619 = vxor.u32 %v1618, 2147483648
    %v1620 = vmul.f32 %v1619, 1.442695
    %v1621 = vpow.pop %v1620
    %v1622 = vadd.f32 %v1621, 1.0
    %v1623 = vrcp.pop %v1622
    %v1624 = vmul.f32 1.0, %v1623
    %v1625 = vtanh.pop %v1618
    %v1627 = vrot.slane %v1447, 7
    %v1629 = vmul.f32 %v1624, %v1627
    %1631 = vrot.lane.b32.xlu0 %v1625, 64
    %v1632 = vpop.permute.xlu0 %1631
    %v1634 = vmul.f32 %v1624, %v1632
    %1636 = vrot.lane.b32.xlu0 %v1634, 32
    %v1637 = vpop.permute.xlu0 %1636
    %v1639 = vadd.f32 %v1629, %v1637
    %v1640 = vtanh.pop %v1639
    %1642 = vrot.lane.b32.xlu0 %v1640, 64
    %v1643 = vpop.permute.xlu0 %1642
    %v1645 = vmul.f32 %v1624, %v1643
    %v1646 = vpack.c.bf16 %v1645, %v1645
    %v1647 = vpack.c.bf16 %v1573, %v1573
    %1649 = vrot.lane.b32.xlu0 %v1647, 32
    %v1650 = vpop.permute.xlu0 %1649
    %v1652 = vsel %vm216, %v1650, 0
    %1654 = vmatprep.subr.bf16.mxu0 0
    %1655 = vmatpush1.bf16.msra.mxu0 %v204
    %1656 = vmatprep.subr.bf16.mxu0 0
    %1657 = vmatpush1.bf16.msra.mxu0 %v205
    %1658 = vmatprep.subr.bf16.mxu0 0
    %1659 = vmatpush1.bf16.msra.mxu0 0
    %1660 = vmatprep.subr.bf16.mxu0 0
    %1661 = vmatpush1.bf16.msra.mxu0 0
    %1662 = vmatprep.subr.bf16.mxu0 0
    %1663 = vmatpush1.bf16.msra.mxu0 0
    %1664 = vmatprep.subr.bf16.mxu0 0
    %1665 = vmatpush1.bf16.msra.mxu0 0
    %1666 = vmatprep.subr.bf16.mxu0 0
    %1667 = vmatpush1.bf16.msra.mxu0 0
    %1668 = vmatprep.subr.bf16.mxu0 0
    %1669 = vmatpush1.bf16.msra.mxu0 0
    %1670 = vmatprep.subr.bf16.mxu0 0
    %1671 = vmatpush1.bf16.msra.mxu0 0
    %1672 = vmatprep.subr.bf16.mxu0 0
    %1673 = vmatpush1.bf16.msra.mxu0 0
    %1674 = vmatprep.subr.bf16.mxu0 0
    %1675 = vmatpush1.bf16.msra.mxu0 0
    %1676 = vmatprep.subr.bf16.mxu0 0
    %1677 = vmatpush1.bf16.msra.mxu0 0
    %1678 = vmatprep.subr.bf16.mxu0 0
    %1679 = vmatpush1.bf16.msra.mxu0 0
    %1680 = vmatprep.subr.bf16.mxu0 0
    %1681 = vmatpush1.bf16.msra.mxu0 0
    %1682 = vmatprep.subr.bf16.mxu0 0
    %1683 = vmatpush1.bf16.msra.mxu0 0
    %1684 = vmatprep.subr.bf16.mxu0 0
    %1685 = vmatpush1.bf16.msra.mxu0 0
    %1686 = vmatprep.mubr.bf16.mxu0 0
    %1687 = vmatmul.mubr.bf16.gmra.mrb[0].mxu0 %v1652
    %v1688 = vpop.f32.mrb[0].mxu0
    %v1689 = vadd.f32 0.0, %v1688
    %v1690 = vpop.f32.mrb[0].mxu0
    %v1691 = vpop.f32.mrb[0].mxu0
    %v1692 = vpop.f32.mrb[0].mxu0
    %1693 = vdwg.mxu0
    %v1695 = vshrl.u32 %v1646, 16
    %v1697 = vrot.slane %v1695, 3
    %1698 = vrot.lane.b32.xlu0 %v1697, 32
    %v1699 = vpop.permute.xlu0 %1698
    %v1701 = vsel %vm216, %v1699, 0
    %1703 = vmatprep.subr.bf16.mxu0 0
    %1704 = vmatpush1.bf16.msra.mxu0 %v202
    %1705 = vmatprep.subr.bf16.mxu0 0
    %1706 = vmatpush1.bf16.msra.mxu0 %v203
    %1707 = vmatprep.subr.bf16.mxu0 0
    %1708 = vmatpush1.bf16.msra.mxu0 0
    %1709 = vmatprep.subr.bf16.mxu0 0
    %1710 = vmatpush1.bf16.msra.mxu0 0
    %1711 = vmatprep.subr.bf16.mxu0 0
    %1712 = vmatpush1.bf16.msra.mxu0 0
    %1713 = vmatprep.subr.bf16.mxu0 0
    %1714 = vmatpush1.bf16.msra.mxu0 0
    %1715 = vmatprep.subr.bf16.mxu0 0
    %1716 = vmatpush1.bf16.msra.mxu0 0
    %1717 = vmatprep.subr.bf16.mxu0 0
    %1718 = vmatpush1.bf16.msra.mxu0 0
    %1719 = vmatprep.subr.bf16.mxu0 0
    %1720 = vmatpush1.bf16.msra.mxu0 0
    %1721 = vmatprep.subr.bf16.mxu0 0
    %1722 = vmatpush1.bf16.msra.mxu0 0
    %1723 = vmatprep.subr.bf16.mxu0 0
    %1724 = vmatpush1.bf16.msra.mxu0 0
    %1725 = vmatprep.subr.bf16.mxu0 0
    %1726 = vmatpush1.bf16.msra.mxu0 0
    %1727 = vmatprep.subr.bf16.mxu0 0
    %1728 = vmatpush1.bf16.msra.mxu0 0
    %1729 = vmatprep.subr.bf16.mxu0 0
    %1730 = vmatpush1.bf16.msra.mxu0 0
    %1731 = vmatprep.subr.bf16.mxu0 0
    %1732 = vmatpush1.bf16.msra.mxu0 0
    %1733 = vmatprep.subr.bf16.mxu0 0
    %1734 = vmatpush1.bf16.msra.mxu0 0
    %1735 = vmatprep.mubr.bf16.mxu0 0
    %1736 = vmatmul.mubr.bf16.gmra.mrb[0].mxu0 %v1701
    %v1737 = vpop.f32.mrb[0].mxu0
    %v1738 = vadd.f32 %v1689, %v1737
    %v1739 = vpop.f32.mrb[0].mxu0
    %v1740 = vpop.f32.mrb[0].mxu0
    %v1741 = vpop.f32.mrb[0].mxu0
    %1742 = vdwg.mxu0
    %v1743 = vadd.f32 %v1738, %v207
    %v1744 = vxor.u32 %v1743, 2147483648
    %v1745 = vmul.f32 %v1744, 1.442695
    %v1746 = vpow.pop %v1745
    %v1747 = vadd.f32 %v1746, 1.0
    %v1748 = vrcp.pop %v1747
    %v1749 = vmul.f32 1.0, %v1748
    %v1750 = vtanh.pop %v1743
    %v1751 = vmul.f32 %v1749, %v1567
    %1753 = vrot.lane.b32.xlu0 %v1750, 64
    %v1754 = vpop.permute.xlu0 %1753
    %v1756 = vmul.f32 %v1749, %v1754
    %1758 = vrot.lane.b32.xlu0 %v1756, 32
    %v1759 = vpop.permute.xlu0 %1758
    %v1761 = vadd.f32 %v1751, %v1759
    %v1762 = vtanh.pop %v1761
    %1764 = vrot.lane.b32.xlu0 %v1762, 64
    %v1765 = vpop.permute.xlu0 %1764
    %v1767 = vmul.f32 %v1749, %v1765
    %v1768 = vmax.f32 %v1767, 0.0
    %v1770 = vrot.slane %v610, 7
    %v1773 = vrot.slane %v802, 6
    %v1776 = vrot.slane %v996, 5
    %v1779 = vrot.slane %v1188, 4
    %v1782 = vrot.slane %v1382, 3
    %v1785 = vrot.slane %v1574, 2
    %v1788 = vrot.slane %v1768, 1
    %vm1790 = vcmask 1040384
    %v1791 = vsel %vm1790, %v417, %v1770
    %vm1792 = vcmask 1041408
    %v1793 = vsel %vm1792, %v1791, %v1773
    %vm1794 = vcmask 1042432
    %v1795 = vsel %vm1794, %v1793, %v1776
    %vm1796 = vcmask 1043456
    %v1797 = vsel %vm1796, %v1795, %v1779
    %vm1798 = vcmask 1044480
    %v1799 = vsel %vm1798, %v1797, %v1782
    %vm1800 = vcmask 1045504
    %v1801 = vsel %vm1800, %v1799, %v1785
    %vm1802 = vcmask 1046528
    %v1803 = vsel %vm1802, %v1801, %v1788
    %1805 = vrot.lane.b32.xlu0 %v1803, 32
    %v1806 = vpop.permute.xlu0 %1805
    %1808 = vst.msk [vmem:[#allocation14] sm:$0xff] %vm216, %v1806
    %1810 = vrot.lane.b32.xlu0 %v1645, 32
    %v1811 = vpop.permute.xlu0 %1810
    %vm1813 = vcmask 261127
    %1814 = vst.msk [vmem:[#allocation15 - $0x7] sm:$0x80] %vm1813, %v1811
    %1816 = vrot.lane.b32.xlu0 %v1639, 96
    %v1817 = vpop.permute.xlu0 %1816
    %1819 = vst.msk [vmem:[#allocation17 - $0x7] sm:$0x80] %vm1813, %v1817
    %1821 = vrot.lane.b32.xlu0 %v1767, 32
    %v1822 = vpop.permute.xlu0 %1821
    %s1824 = scalar_lea.vmem [#allocation15], 1
    %vm1825 = vcmask 253952
    %1826 = vst.msk [vmem:[%s1824] sm:$0x1] %vm1825, %v1822
    %1828 = vrot.lane.b32.xlu0 %v1761, 96
    %v1829 = vpop.permute.xlu0 %1828
    %s1831 = scalar_lea.vmem [#allocation17], 1
    %1832 = vst.msk [vmem:[%s1831] sm:$0x1] %vm1825, %v1829
    // Predicated region
    $region54: #{encoder_forward.1} parent=1 // pred_check
      _
    $region55: #{encoder_forward.1} parent=1 // pred_check_branch
      %1834 = sbr.rel (0) target = $region57
    $region56: #{encoder_forward.1} parent=1 // pred_region
      %s1836 = ssub.s32 128, 128
      %1837 = vsyncadd [#allocation5], %s1836
      %s1839 = sshll.u32 [#allocation14], 4
      %s1840 = int_to_ptr.vmem [resolvable:$true] %s1839
      %1842 = dma.vmem_to_hbm [thread:$0]  %s1840, 128, %s7, [#allocation5]
    $region57: #{encoder_forward.1} parent=1 // pred_fallthru
      _
    // Predicated region
    $region58: #{encoder_forward.1} parent=1 // pred_check
      _
    $region59: #{encoder_forward.1} parent=1 // pred_check_branch
      %1844 = sbr.rel (0) target = $region61
    $region60: #{encoder_forward.1} parent=1 // pred_region
      %s1846 = ssub.s32 32, 32
      %1847 = vsyncadd [#allocation16], %s1846
      %s1848 = sshll.u32 [#allocation15], 4
      %s1849 = int_to_ptr.vmem [resolvable:$true] %s1848
      %1854 = dma.vmem_to_hbm [thread:$0]  %s1849, 32, %s8, [#allocation16], 16, 16, 1
    $region61: #{encoder_forward.1} parent=1 // pred_fallthru
      _
    // Predicated region
    $region62: #{encoder_forward.1} parent=1 // pred_check
      _
    $region63: #{encoder_forward.1} parent=1 // pred_check_branch
      %1856 = sbr.rel (0) target = $region65
    $region64: #{encoder_forward.1} parent=1 // pred_region
      %s1858 = ssub.s32 32, 32
      %1859 = vsyncadd [#allocation16], %s1858
      %s1860 = sshll.u32 [#allocation17], 4
      %s1861 = int_to_ptr.vmem [resolvable:$true] %s1860
      %1866 = dma.vmem_to_hbm [thread:$0]  %s1861, 32, %s9, [#allocation16], 16, 16, 1
    $region65: #{encoder_forward.1} parent=1 // pred_fallthru
      _
    // Predicated region
    $region66: #{encoder_forward.1} parent=1 // pred_check
      _
    $region67: #{encoder_forward.1} parent=1 // pred_check_branch
      %1868 = sbr.rel (0) target = $region69
    $region68: #{encoder_forward.1} parent=1 // pred_region
      %1869 = dma.done [#allocation5], 128
    $region69: #{encoder_forward.1} parent=1 // pred_fallthru
      _
    // Predicated region
    $region70: #{encoder_forward.1} parent=1 // pred_check
      _
    $region71: #{encoder_forward.1} parent=1 // pred_check_branch
      %1871 = sbr.rel (0) target = $region73
    $region72: #{encoder_forward.1} parent=1 // pred_region
      %1872 = dma.done [#allocation16], 32
    $region73: #{encoder_forward.1} parent=1 // pred_fallthru
      _
    // Predicated region
    $region74: #{encoder_forward.1} parent=1 // pred_check
      _
    $region75: #{encoder_forward.1} parent=1 // pred_check_branch
      %1874 = sbr.rel (0) target = $region77
    $region76: #{encoder_forward.1} parent=1 // pred_region
      %1875 = dma.done [#allocation16], 32
    $region77: #{encoder_forward.1} parent=1 // pred_fallthru
      _
    %1876 = vsyncpa [#allocation4], 1
    %1877 = vsyncpa [#allocation7], 1
    %1878 = vsyncpa [#allocation10], 1
    %1879 = vsyncpa [#allocation13], 1
    %1880 = vsyncpa [#allocation5], 1
    %1881 = vsyncpa [#allocation16], 1

</llo_original>
